<compile_context>
chip_gen: v7x
topology: tpu7x:2x2x1
jax: 0.10.0
libtpu: 0.0.40
codegen_flags: <defaults>
</compile_context>

<pallas_src>
import numpy as np
import jax
import jax.numpy as jnp
from jax import lax
from jax.experimental import pallas as pl
from jax.experimental.pallas import tpu as pltpu


# ----------------------------------------------------------------------------
# One-time probe: pltpu.roll is expected to match jnp.roll
# (result[i] = x[(i - shift) % n]).  Probe on the real backend so the static
# tap shifts below are built with the right sign whatever the convention.
# ----------------------------------------------------------------------------
def _probe_roll_convention():
    def k(x_ref, o_ref):
        o_ref[...] = pltpu.roll(x_ref[...], 1, axis=1)

    x = jnp.tile(jnp.arange(128, dtype=jnp.float32)[None, :], (8, 1))
    y = pl.pallas_call(k, out_shape=jax.ShapeDtypeStruct((8, 128), jnp.float32))(x)
    return 1 if int(jax.device_get(y[0, 0])) == 127 else -1


try:
    _ROLL_SIGN = _probe_roll_convention()
except Exception:  # defensive fallback to the documented jnp.roll convention
    _ROLL_SIGN = 1


# ----------------------------------------------------------------------------
# Host-side constant builders (pure numpy — shapes only, no traced data)
# ----------------------------------------------------------------------------
def _bilinear_matrix_np(n_in, n_out):
    # 1-D interpolation matrix matching torch Upsample(align_corners=True).
    if n_out == 1:
        src = np.zeros((1,), np.float64)
    else:
        src = np.arange(n_out, dtype=np.float64) * (n_in - 1) / (n_out - 1)
    lo = np.clip(np.floor(src).astype(np.int64), 0, n_in - 1)
    hi = np.clip(lo + 1, 0, n_in - 1)
    frac = (src - lo).astype(np.float32)
    A = np.zeros((n_out, n_in), np.float32)
    A[np.arange(n_out), lo] += 1.0 - frac
    A[np.arange(n_out), hi] += frac
    return A


def _make_tap_masks_np(N, H, W):
    # For lane layout c = n*H*W + h*W + w, tap (e, d) reads (h+e-1, w+d-1).
    # mask[t] zeroes lanes whose source falls outside the image ('same' zero pad
    # and image-to-image wrap of the combined lane axis).
    L = N * H * W
    hh = np.tile(np.repeat(np.arange(H), W), N)
    ww = np.tile(np.arange(W), N * H)
    masks = np.zeros((9, 1, L), np.float32)
    offsets = []
    for e in range(3):
        for d in range(3):
            eo, do = e - 1, d - 1
            valid = ((hh + eo >= 0) & (hh + eo < H) &
                     (ww + do >= 0) & (ww + do < W))
            masks[e * 3 + d, 0, :] = valid.astype(np.float32)
            offsets.append(eo * W + do)
    return masks, tuple(offsets)


# ----------------------------------------------------------------------------
# Pallas kernels
# ----------------------------------------------------------------------------
def _upsample_kernel(x_ref, m_ref, b_ref, o_ref):
    # out = x_flat @ M + bias_row : one lane-dense MXU matmul.
    o_ref[...] = (jnp.dot(x_ref[...], m_ref[...],
                          preferred_element_type=jnp.float32) + b_ref[...])


def _make_double_conv_kernel(shifts):
    # shifts[t] is the static pltpu.roll amount realizing column offset
    # (e-1)*W + (d-1) on the combined (n, h, w) lane axis.
    def kernel(y_ref, w1_ref, b1_ref, w2_ref, b2_ref, mask_ref, o_ref):
        def conv_bn_relu(x, w_ref, b_ref):
            cout, nl = b_ref.shape[0], x.shape[1]
            # accumulator initialised from the broadcast bias (no zeros + add)
            acc = jnp.broadcast_to(b_ref[...], (cout, nl))
            for t, s in enumerate(shifts):
                p = jnp.dot(w_ref[t], x, preferred_element_type=jnp.float32)
                if s:  # s == 0 only for the centre tap (mask is all-ones there)
                    p = pltpu.roll(p, s, axis=1)
                    p = p * mask_ref[t]
                acc = acc + p
            # BatchNorm (train stats) over (N, H, W): pure per-row lane
            # reductions — no group-average matmul.
            inv_n = 1.0 / nl
            mean = jnp.sum(acc, axis=1, keepdims=True) * inv_n
            cen = acc - mean
            var = jnp.sum(cen * cen, axis=1, keepdims=True) * inv_n
            return jnp.maximum(cen * lax.rsqrt(var + 1e-5), 0.0)

        h1 = conv_bn_relu(y_ref[...], w1_ref, b1_ref)
        o_ref[...] = conv_bn_relu(h1, w2_ref, b2_ref)

    return kernel


# ----------------------------------------------------------------------------
# Parameter folding (traceable: touches weights with jnp, constants with np)
# ----------------------------------------------------------------------------
def _prep_upsample_path(up_w, up_b, dw_w, dw_b, H, W, upfactor):
    Cout, Cin = up_w.shape[0], up_w.shape[1]
    Ho, Wo = H * upfactor, W * upfactor
    Hd, Wd = (Ho - 1) // 2 + 1, (Wo - 1) // 2 + 1        # k=3, s=2, p=1 output size
    A_pad = np.pad(_bilinear_matrix_np(H, Ho), ((1, 1), (0, 0)))    # (Ho+2, H)
    B_pad = np.pad(_bilinear_matrix_np(W, Wo), ((1, 1), (0, 0)))    # (Wo+2, W)
    # strided row/col gathers for the stride-2 depthwise taps
    A_str = A_pad[2 * np.arange(Hd)[:, None] + np.arange(3)[None, :]]   # (Hd, 3, H)
    B_str = B_pad[2 * np.arange(Wd)[:, None] + np.arange(3)[None, :]]   # (Wd, 3, W)
    R = jnp.asarray(np.transpose(B_str, (1, 2, 0)))                     # (3, W, Wd)

    w3 = dw_w.reshape(Cout, 3, 3).astype(jnp.float32)                   # per-channel 3x3
    # Lp[c,j,p,h] = sum_i dw[c,i,j] * A_pad[2p+i, h]
    Lp = jnp.einsum("cij,pih->cjph", w3, jnp.asarray(A_str))            # (Cout, 3, Hd, H)
    w1 = up_w.reshape(Cout, Cin).astype(jnp.float32)
    # LpW[j,(co,p),(ci,h)] = w1[co,ci] * Lp[co,j,p,h]
    LpW = jnp.einsum("oc,ojph->jopch", w1, Lp).reshape(3, Cout * Hd, Cin * H)
    # collapse the separable per-tap structure into a single operator:
    # M[(ci,h,w),(co,p,q)] = sum_j LpW[j,(co,p),(ci,h)] * R[j,w,q]
    M = jnp.einsum("jok,jwq->kwoq", LpW, R).reshape(Cin * H * W, Cout * Hd * Wd)
    # bias image: 1x1-conv bias upsampled+padded+dwconv'ed (constant interior,
    # smaller at the zero-padded border) plus the depthwise bias
    ups_one = jnp.einsum("cjph,hw,jwq->cpq", Lp,
                         jnp.ones((H, W), jnp.float32), R)              # (Cout, Hd, Wd)
    bias_row = (up_b.reshape(Cout, 1, 1).astype(jnp.float32) * ups_one
                + dw_b.reshape(Cout, 1, 1).astype(jnp.float32)
                ).reshape(1, Cout * Hd * Wd)
    return M, bias_row, Hd, Wd


# ----------------------------------------------------------------------------
# Stage wrappers
# ----------------------------------------------------------------------------
def upsample_path(x1, up_w, up_b, dw_w, dw_b, upfactor=4):
    N, Cin, H, W = x1.shape
    Cout = up_w.shape[0]
    M, bias_row, Hd, Wd = _prep_upsample_path(up_w, up_b, dw_w, dw_b, H, W, upfactor)
    K = Cin * H * W
    Lout = Cout * Hd * Wd
    xr = x1.reshape(N, K).astype(jnp.float32)           # pure reshape, no transpose
    out = pl.pallas_call(
        _upsample_kernel,
        out_shape=jax.ShapeDtypeStruct((N, Lout), jnp.float32),
        grid=(1,),
        in_specs=[
            pl.BlockSpec((N, K), lambda i: (0, 0)),
            pl.BlockSpec((K, Lout), lambda i: (0, 0)),
            pl.BlockSpec((1, Lout), lambda i: (0, 0)),
        ],
        out_specs=pl.BlockSpec((N, Lout), lambda i: (0, 0)),
        compiler_params=pltpu.CompilerParams(dimension_semantics=("arbitrary",)),
    )(xr, M, bias_row)
    return out.reshape(N, Cout, Hd, Wd)


def double_conv(y, w1, b1, w2, b2):
    N, Cin, H, W = y.shape
    Cout = w1.shape[0]
    L = N * H * W
    masks_np, offsets = _make_tap_masks_np(N, H, W)
    shifts = tuple((_ROLL_SIGN * (-o)) % L for o in offsets)
    masks = jnp.asarray(masks_np)                                        # (9, 1, L)
    w1t = jnp.transpose(w1.astype(jnp.float32), (2, 3, 0, 1)).reshape(9, Cout, Cin)
    w2t = jnp.transpose(w2.astype(jnp.float32), (2, 3, 0, 1)).reshape(9, Cout, Cout)
    b1c = b1.astype(jnp.float32).reshape(Cout, 1)
    b2c = b2.astype(jnp.float32).reshape(Cout, 1)
    # (N, C, H, W) -> (C, N*H*W): channels on sublanes, batch+spatial on lanes
    yr = jnp.transpose(y, (1, 0, 2, 3)).reshape(Cin, L).astype(jnp.float32)
    out = pl.pallas_call(
        _make_double_conv_kernel(shifts),
        out_shape=jax.ShapeDtypeStruct((Cout, L), jnp.float32),
        grid=(1,),
        in_specs=[
            pl.BlockSpec((Cin, L), lambda i: (0, 0)),
            pl.BlockSpec((9, Cout, Cin), lambda i: (0, 0, 0)),
            pl.BlockSpec((Cout, 1), lambda i: (0, 0)),
            pl.BlockSpec((9, Cout, Cout), lambda i: (0, 0, 0)),
            pl.BlockSpec((Cout, 1), lambda i: (0, 0)),
            pl.BlockSpec((9, 1, L), lambda i: (0, 0, 0)),
        ],
        out_specs=pl.BlockSpec((Cout, L), lambda i: (0, 0)),
        compiler_params=pltpu.CompilerParams(dimension_semantics=("arbitrary",)),
    )(yr, w1t, b1c, w2t, b2c, masks)
    return jnp.transpose(out.reshape(Cout, N, H, W), (1, 0, 2, 3))


# ----------------------------------------------------------------------------
# Full UpDecoder_1 forward
# ----------------------------------------------------------------------------
def updecoder1_forward(params, x1, x2=None, upfactor=4):
    x = upsample_path(x1, params["up_w"], params["up_b"],
                      params["dw_w"], params["dw_b"], upfactor)
    if x2 is None:
        return x
    diffY = x2.shape[2] - x.shape[2]
    diffX = x2.shape[3] - x.shape[3]
    x = jnp.pad(
        x,
        ((0, 0), (0, 0),
         (diffY // 2, diffY - diffY // 2),
         (diffX // 2, diffX - diffX // 2)),
    )
    y = jnp.concatenate([x2, x], axis=1)
    return double_conv(y, params["dc1_w"], params["dc1_b"],
                       params["dc2_w"], params["dc2_b"])


# ----------------------------------------------------------------------------
# Pure-JAX reference (in-script sanity check)
# ----------------------------------------------------------------------------
def _ref_forward(params, x1, x2=None, upfactor=4):
    N, C, H, W = x1.shape
    A = jnp.asarray(_bilinear_matrix_np(H, H * upfactor))
    B = jnp.asarray(_bilinear_matrix_np(W, W * upfactor))
    x = jnp.einsum("oh,nchw,pw->ncop", A, x1, B)
    x = lax.conv_general_dilated(x, params["up_w"], (1, 1), "VALID") \
        + params["up_b"][None, :, None, None]
    x = lax.conv_general_dilated(x, params["dw_w"], (2, 2), ((1, 1), (1, 1)),
                                 feature_group_count=x.shape[1]) \
        + params["dw_b"][None, :, None, None]
    if x2 is None:
        return x
    diffY = x2.shape[2] - x.shape[2]
    diffX = x2.shape[3] - x.shape[3]
    x = jnp.pad(x, ((0, 0), (0, 0),
                    (diffY // 2, diffY - diffY // 2),
                    (diffX // 2, diffX - diffX // 2)))
    y = jnp.concatenate([x2, x], axis=1)

    def cbr(z, w, b):
        z = lax.conv_general_dilated(z, w, (1, 1), ((1, 1), (1, 1))) \
            + b[None, :, None, None]
        mean = jnp.mean(z, axis=(0, 2, 3), keepdims=True)
        var = jnp.mean((z - mean) ** 2, axis=(0, 2, 3), keepdims=True)
        return jnp.maximum((z - mean) * lax.rsqrt(var + 1e-5), 0.0)

    y = cbr(y, params["dc1_w"], params["dc1_b"])
    y = cbr(y, params["dc2_w"], params["dc2_b"])
    return y


# ----------------------------------------------------------------------------
if __name__ == "__main__":
    in_channels, out_channels, upfactor = 8, 4, 4
    N, H, W = 2, 8, 8

    key = jax.random.PRNGKey(0)
    ks = jax.random.split(key, 10)
    x1 = jax.random.normal(ks[0], (N, in_channels, H, W), jnp.float32)
    # skip tensor: channels chosen so cat([x2, x1], dim=1) has in_channels
    x2 = jax.random.normal(
        ks[1], (N, in_channels - out_channels, H * upfactor // 2, W * upfactor // 2),
        jnp.float32)

    # Deterministic synthetic parameters (shapes from the module __init__).
    params = {
        "up_w": 0.1 * jax.random.normal(ks[2], (out_channels, in_channels, 1, 1), jnp.float32),
        "up_b": 0.1 * jax.random.normal(ks[3], (out_channels,), jnp.float32),
        "dw_w": 0.1 * jax.random.normal(ks[4], (out_channels, 1, 3, 3), jnp.float32),
        "dw_b": 0.1 * jax.random.normal(ks[5], (out_channels,), jnp.float32),
        "dc1_w": 0.1 * jax.random.normal(ks[6], (out_channels, in_channels, 3, 3), jnp.float32),
        "dc1_b": 0.1 * jax.random.normal(ks[7], (out_channels,), jnp.float32),
        "dc2_w": 0.1 * jax.random.normal(ks[8], (out_channels, out_channels, 3, 3), jnp.float32),
        "dc2_b": 0.1 * jax.random.normal(ks[9], (out_channels,), jnp.float32),
    }
    # BatchNorm2d default affine (weight=1, bias=0) is identity after normalization.

    fwd = jax.jit(updecoder1_forward)
    out_no_skip = jax.block_until_ready(fwd(params, x1, None))
    out_skip = jax.block_until_ready(fwd(params, x1, x2))

    ref_no_skip = _ref_forward(params, x1, None, upfactor)
    ref_skip = _ref_forward(params, x1, x2, upfactor)

    assert out_no_skip.shape == (N, out_channels, H * upfactor // 2, W * upfactor // 2)
    assert out_skip.shape == (N, out_channels, H * upfactor // 2, W * upfactor // 2)
    assert jnp.allclose(out_no_skip, ref_no_skip, atol=1e-3, rtol=1e-3)
    assert jnp.allclose(out_skip, ref_skip, atol=1e-3, rtol=1e-3)

    print("KERNEL_OK")
</pallas_src>

<mosaic_0001>
module attributes {stable_mosaic.version = 11 : i64} {
  func.func @k(%arg0: memref<8x128xf32, #tpu.memory_space<vmem>>, %arg1: memref<8x128xf32, #tpu.memory_space<vmem>>) attributes {dimension_semantics = [], scalar_prefetch = 0 : i64, scratch_operands = 0 : i64, tpu.core_type = #tpu.core_type<tc>} {
    %c0 = arith.constant 0 : index
    %c0_0 = arith.constant 0 : index
    %0 = vector.load %arg0[%c0, %c0_0] : memref<8x128xf32, #tpu.memory_space<vmem>>, vector<8x128xf32>
    %c1_i32 = arith.constant 1 : i32
    %1 = tpu.dynamic_rotate %0 by %c1_i32 dim 1 : vector<8x128xf32>, i32 -> vector<8x128xf32>
    %c0_1 = arith.constant 0 : index
    %c0_2 = arith.constant 0 : index
    %2 = vector.load %arg1[%c0_1, %c0_2] : memref<8x128xf32, #tpu.memory_space<vmem>>, vector<8x128xf32>
    tpu.vector_store %arg1[%c0_1, %c0_2], %1 {strides = array<i32>} : memref<8x128xf32, #tpu.memory_space<vmem>>, vector<8x128xf32>,
    return
  }
}

module attributes {stable_mosaic.version = 11 : i64} {
  func.func @_upsample_kernel(%arg0: i32, %arg1: memref<2x512xf32, #tpu.memory_space<vmem>>, %arg2: memref<512x1024xf32, #tpu.memory_space<vmem>>, %arg3: memref<1x1024xf32, #tpu.memory_space<vmem>>, %arg4: memref<2x1024xf32, #tpu.memory_space<vmem>>) attributes {dimension_semantics = [#tpu.dimension_semantics<arbitrary>], iteration_bounds = array<i64: 1>, scalar_prefetch = 0 : i64, scratch_operands = 0 : i64, tpu.core_type = #tpu.core_type<tc>, window_params = [{pipeline_mode = #tpu.pipeline_mode<synchronous>, transform_indices = @transform_0, window_bounds = array<i64: 2, 512>}, {pipeline_mode = #tpu.pipeline_mode<synchronous>, transform_indices = @transform_1, window_bounds = array<i64: 512, 1024>}, {pipeline_mode = #tpu.pipeline_mode<synchronous>, transform_indices = @transform_2, window_bounds = array<i64: 1, 1024>}, {pipeline_mode = #tpu.pipeline_mode<synchronous>, transform_indices = @transform_3, window_bounds = array<i64: 2, 1024>}]} {
    %c0 = arith.constant 0 : index
    %c0_0 = arith.constant 0 : index
    %0 = vector.load %arg1[%c0, %c0_0] : memref<2x512xf32, #tpu.memory_space<vmem>>, vector<2x512xf32>
    %c0_1 = arith.constant 0 : index
    %c0_2 = arith.constant 0 : index
    %1 = vector.load %arg2[%c0_1, %c0_2] : memref<512x1024xf32, #tpu.memory_space<vmem>>, vector<512x1024xf32>
    %cst = arith.constant dense<0.000000e+00> : vector<2x1024xf32>
    %2 = tpu.matmul %0, %1, %cst {dimension_numbers = #tpu.dot_dimension_numbers<[1], [0], [0], [1], [0, 0, 1, 1], [], []>} : vector<2x512xf32>, vector<512x1024xf32>, vector<2x1024xf32> -> vector<2x1024xf32>
    %c0_3 = arith.constant 0 : index
    %c0_4 = arith.constant 0 : index
    %3 = vector.load %arg3[%c0_3, %c0_4] : memref<1x1024xf32, #tpu.memory_space<vmem>>, vector<1x1024xf32>
    %4 = vector.broadcast %3 : vector<1x1024xf32> to vector<2x1024xf32>
    %5 = arith.addf %2, %4 : vector<2x1024xf32>
    %c0_5 = arith.constant 0 : index
    %c0_6 = arith.constant 0 : index
    %6 = vector.load %arg4[%c0_5, %c0_6] : memref<2x1024xf32, #tpu.memory_space<vmem>>, vector<2x1024xf32>
    tpu.vector_store %arg4[%c0_5, %c0_6], %5 {strides = array<i32>} : memref<2x1024xf32, #tpu.memory_space<vmem>>, vector<2x1024xf32>,
    return
  }
  func.func @transform_0(%arg0: i32) -> (i32, i32) {
    %c0_i32 = arith.constant 0 : i32
    %c0_i32_0 = arith.constant 0 : i32
    %c0_i32_1 = arith.constant 0 : i32
    return %c0_i32, %c0_i32_0 : i32, i32
  }
  func.func @transform_1(%arg0: i32) -> (i32, i32) {
    %c0_i32 = arith.constant 0 : i32
    %c0_i32_0 = arith.constant 0 : i32
    %c0_i32_1 = arith.constant 0 : i32
    return %c0_i32, %c0_i32_0 : i32, i32
  }
  func.func @transform_2(%arg0: i32) -> (i32, i32) {
    %c0_i32 = arith.constant 0 : i32
    %c0_i32_0 = arith.constant 0 : i32
    %c0_i32_1 = arith.constant 0 : i32
    return %c0_i32, %c0_i32_0 : i32, i32
  }
  func.func @transform_3(%arg0: i32) -> (i32, i32) {
    %c0_i32 = arith.constant 0 : i32
    %c0_i32_0 = arith.constant 0 : i32
    %c0_i32_1 = arith.constant 0 : i32
    return %c0_i32, %c0_i32_0 : i32, i32
  }
}

</mosaic_0001>

<llo_original>
// kernel: tpu_custom_call.1
$region0: #{tpu_custom_call.1}
  #allocation0 [shape = 'u32[]', space=smem, size = 0x4, offset = 0x4, fixed_abs, tag = 'smem constant byte address 0x4 - core index']
  #allocation1 [shape = 'u32[144,128]{1,0:T(1,128)}', space=vmem, size = 0x12000, scoped, tag = 'internal scratch']
  %s0 = inlined_call_operand.hbm [shape: f32[8,128], index: 0, kind: input, shape index: {}]
  %s1 = inlined_call_operand.hbm [shape: f32[8,128], index: 1, kind: output, shape index: {}]
  %s2 = sld [smem:[#allocation0]]
  $region18: #{tpu_custom_call.1} parent=0
    _
  %s4 = ssub.s32 1, %s2
  %s5 = scalar_select 0, %s4, %s2
  $region1: #{tpu_custom_call.1} parent=0
    #allocation2 [shape = 'u8[4096]{0}', space=vmem, size = 0x1000, scoped, tag = 'input window, operand 0, single buffered']
    #allocation3 [shape = 's32[1]{0}', space=sflag, size = 0x4, scoped, tag = 'scoped memory for tpu_custom_call.1']
    #allocation4 [shape = 's32[1]{0}', space=sflag, size = 0x4, scoped, tag = 'scoped memory for tpu_custom_call.1']
    #allocation5 [shape = 'u8[4096]{0}', space=vmem, size = 0x1000, scoped, tag = 'output window, operand 0, single buffered']
    %6 = vsyncpa [#allocation3], 0
    %7 = vsyncpa [#allocation4], 0
    // Predicated region
    $region2: #{tpu_custom_call.1} parent=1 // pred_check
      _
    $region3: #{tpu_custom_call.1} parent=1 // pred_check_branch
      %9 = sbr.rel (0) target = $region5
    $region4: #{tpu_custom_call.1} parent=1 // pred_region
      %s11 = ssub.s32 128, 128
      %12 = vsyncadd [#allocation3], %s11
      %s14 = sshll.u32 [#allocation2], 4
      %s15 = int_to_ptr.vmem [resolvable:$true] %s14
      %17 = dma.hbm_to_vmem [thread:$0]  %s0, 128, %s15, [#allocation3]
    $region5: #{tpu_custom_call.1} parent=1 // pred_fallthru
      _
    // Predicated region
    $region6: #{tpu_custom_call.1} parent=1 // pred_check
      _
    $region7: #{tpu_custom_call.1} parent=1 // pred_check_branch
      %19 = sbr.rel (0) target = $region9
    $region8: #{tpu_custom_call.1} parent=1 // pred_region
      %20 = dma.done [#allocation3], 128
    $region9: #{tpu_custom_call.1} parent=1 // pred_fallthru
      _
    %v21 = vld [vmem:[#allocation2] sm:$0xff]
    %22 = vrot.lane.b32.xlu0 %v21, 1
    %v23 = vpop.permute.xlu0 %22
    %24 = vst [vmem:[#allocation5] sm:$0xff] %v23
    // Predicated region
    $region10: #{tpu_custom_call.1} parent=1 // pred_check
      _
    $region11: #{tpu_custom_call.1} parent=1 // pred_check_branch
      %26 = sbr.rel (0) target = $region13
    $region12: #{tpu_custom_call.1} parent=1 // pred_region
      %s28 = ssub.s32 128, 128
      %29 = vsyncadd [#allocation4], %s28
      %s31 = sshll.u32 [#allocation5], 4
      %s32 = int_to_ptr.vmem [resolvable:$true] %s31
      %34 = dma.vmem_to_hbm [thread:$0]  %s32, 128, %s1, [#allocation4]
    $region13: #{tpu_custom_call.1} parent=1 // pred_fallthru
      _
    // Predicated region
    $region14: #{tpu_custom_call.1} parent=1 // pred_check
      _
    $region15: #{tpu_custom_call.1} parent=1 // pred_check_branch
      %36 = sbr.rel (0) target = $region17
    $region16: #{tpu_custom_call.1} parent=1 // pred_region
      %37 = dma.done [#allocation4], 128
    $region17: #{tpu_custom_call.1} parent=1 // pred_fallthru
      _
    %38 = vsyncpa [#allocation3], 1
    %39 = vsyncpa [#allocation4], 1

// kernel: updecoder1_forward.1
$region0: #{updecoder1_forward.1}
  #allocation0 [shape = 'u32[]', space=smem, size = 0x4, offset = 0x4, fixed_abs, tag = 'smem constant byte address 0x4 - core index']
  #allocation1 [shape = 'u32[144,128]{1,0:T(1,128)}', space=vmem, size = 0x12000, scoped, tag = 'internal scratch']
  %s0 = inlined_call_operand.vmem [shape: f32[2,512], index: 0, kind: input, shape index: {}]
  %s1 = inlined_call_operand.vmem [shape: f32[512,1024], index: 1, kind: input, shape index: {}]
  %s2 = inlined_call_operand.vmem [shape: f32[1,1024], index: 2, kind: input, shape index: {}]
  %s3 = inlined_call_operand.vmem [shape: f32[2,1024], index: 3, kind: output, shape index: {}]
  %s4 = sld [smem:[#allocation0]]
  $region22: #{updecoder1_forward.1} parent=0
    _
  %s6 = ssub.s32 1, %s4
  %s7 = scalar_select 0, %s6, %s4
  // Predicated region
  $region2: #{updecoder1_forward.1} parent=0 // pred_check
    _
  $region3: #{updecoder1_forward.1} parent=0 // pred_check_branch
    %9 = sbr.rel (0) target = $region5
  $region4: #{updecoder1_forward.1} parent=0 // pred_region
    _
  $region5: #{updecoder1_forward.1} parent=0 // pred_fallthru
    _
  // Predicated region
  $region6: #{updecoder1_forward.1} parent=0 // pred_check
    _
  $region7: #{updecoder1_forward.1} parent=0 // pred_check_branch
    %11 = sbr.rel (0) target = $region9
  $region8: #{updecoder1_forward.1} parent=0 // pred_region
    _
  $region9: #{updecoder1_forward.1} parent=0 // pred_fallthru
    _
  // Predicated region
  $region10: #{updecoder1_forward.1} parent=0 // pred_check
    _
  $region11: #{updecoder1_forward.1} parent=0 // pred_check_branch
    %13 = sbr.rel (0) target = $region13
  $region12: #{updecoder1_forward.1} parent=0 // pred_region
    _
  $region13: #{updecoder1_forward.1} parent=0 // pred_fallthru
    _
  %v14 = vld [vmem:[%s0] sm:$0xff]
  %v15 = vld [vmem:[%s1] sm:$0xff]
  %v16 = vld [vmem:[%s1 + $0x8] sm:$0xff]
  %v17 = vld [vmem:[%s1 + $0x10] sm:$0xff]
  %v18 = vld [vmem:[%s1 + $0x18] sm:$0xff]
  %v19 = vld [vmem:[%s1 + $0x20] sm:$0xff]
  %v20 = vld [vmem:[%s1 + $0x28] sm:$0xff]
  %v21 = vld [vmem:[%s1 + $0x30] sm:$0xff]
  %v22 = vld [vmem:[%s1 + $0x38] sm:$0xff]
  %v23 = vld [vmem:[%s1 + $0x40] sm:$0xff]
  %v24 = vld [vmem:[%s1 + $0x48] sm:$0xff]
  %v25 = vld [vmem:[%s1 + $0x50] sm:$0xff]
  %v26 = vld [vmem:[%s1 + $0x58] sm:$0xff]
  %v27 = vld [vmem:[%s1 + $0x60] sm:$0xff]
  %v28 = vld [vmem:[%s1 + $0x68] sm:$0xff]
  %v29 = vld [vmem:[%s1 + $0x70] sm:$0xff]
  %v30 = vld [vmem:[%s1 + $0x78] sm:$0xff]
  %v31 = vld [vmem:[%s1 + $0x80] sm:$0xff]
  %v32 = vld [vmem:[%s1 + $0x88] sm:$0xff]
  %v33 = vld [vmem:[%s1 + $0x90] sm:$0xff]
  %v34 = vld [vmem:[%s1 + $0x98] sm:$0xff]
  %v35 = vld [vmem:[%s1 + $0xa0] sm:$0xff]
  %v36 = vld [vmem:[%s1 + $0xa8] sm:$0xff]
  %v37 = vld [vmem:[%s1 + $0xb0] sm:$0xff]
  %v38 = vld [vmem:[%s1 + $0xb8] sm:$0xff]
  %v39 = vld [vmem:[%s1 + $0xc0] sm:$0xff]
  %v40 = vld [vmem:[%s1 + $0xc8] sm:$0xff]
  %v41 = vld [vmem:[%s1 + $0xd0] sm:$0xff]
  %v42 = vld [vmem:[%s1 + $0xd8] sm:$0xff]
  %v43 = vld [vmem:[%s1 + $0xe0] sm:$0xff]
  %v44 = vld [vmem:[%s1 + $0xe8] sm:$0xff]
  %v45 = vld [vmem:[%s1 + $0xf0] sm:$0xff]
  %v46 = vld [vmem:[%s1 + $0xf8] sm:$0xff]
  %v47 = vld [vmem:[%s1 + $0x100] sm:$0xff]
  %v48 = vld [vmem:[%s1 + $0x108] sm:$0xff]
  %v49 = vld [vmem:[%s1 + $0x110] sm:$0xff]
  %v50 = vld [vmem:[%s1 + $0x118] sm:$0xff]
  %v51 = vld [vmem:[%s1 + $0x120] sm:$0xff]
  %v52 = vld [vmem:[%s1 + $0x128] sm:$0xff]
  %v53 = vld [vmem:[%s1 + $0x130] sm:$0xff]
  %v54 = vld [vmem:[%s1 + $0x138] sm:$0xff]
  %v55 = vld [vmem:[%s1 + $0x140] sm:$0xff]
  %v56 = vld [vmem:[%s1 + $0x148] sm:$0xff]
  %v57 = vld [vmem:[%s1 + $0x150] sm:$0xff]
  %v58 = vld [vmem:[%s1 + $0x158] sm:$0xff]
  %v59 = vld [vmem:[%s1 + $0x160] sm:$0xff]
  %v60 = vld [vmem:[%s1 + $0x168] sm:$0xff]
  %v61 = vld [vmem:[%s1 + $0x170] sm:$0xff]
  %v62 = vld [vmem:[%s1 + $0x178] sm:$0xff]
  %v63 = vld [vmem:[%s1 + $0x180] sm:$0xff]
  %v64 = vld [vmem:[%s1 + $0x188] sm:$0xff]
  %v65 = vld [vmem:[%s1 + $0x190] sm:$0xff]
  %v66 = vld [vmem:[%s1 + $0x198] sm:$0xff]
  %v67 = vld [vmem:[%s1 + $0x1a0] sm:$0xff]
  %v68 = vld [vmem:[%s1 + $0x1a8] sm:$0xff]
  %v69 = vld [vmem:[%s1 + $0x1b0] sm:$0xff]
  %v70 = vld [vmem:[%s1 + $0x1b8] sm:$0xff]
  %v71 = vld [vmem:[%s1 + $0x1c0] sm:$0xff]
  %v72 = vld [vmem:[%s1 + $0x1c8] sm:$0xff]
  %v73 = vld [vmem:[%s1 + $0x1d0] sm:$0xff]
  %v74 = vld [vmem:[%s1 + $0x1d8] sm:$0xff]
  %v75 = vld [vmem:[%s1 + $0x1e0] sm:$0xff]
  %v76 = vld [vmem:[%s1 + $0x1e8] sm:$0xff]
  %v77 = vld [vmem:[%s1 + $0x1f0] sm:$0xff]
  %v78 = vld [vmem:[%s1 + $0x1f8] sm:$0xff]
  %v79 = vld [vmem:[%s1 + $0x200] sm:$0xff]
  %v80 = vld [vmem:[%s1 + $0x208] sm:$0xff]
  %v81 = vld [vmem:[%s1 + $0x210] sm:$0xff]
  %v82 = vld [vmem:[%s1 + $0x218] sm:$0xff]
  %v83 = vld [vmem:[%s1 + $0x220] sm:$0xff]
  %v84 = vld [vmem:[%s1 + $0x228] sm:$0xff]
  %v85 = vld [vmem:[%s1 + $0x230] sm:$0xff]
  %v86 = vld [vmem:[%s1 + $0x238] sm:$0xff]
  %v87 = vld [vmem:[%s1 + $0x240] sm:$0xff]
  %v88 = vld [vmem:[%s1 + $0x248] sm:$0xff]
  %v89 = vld [vmem:[%s1 + $0x250] sm:$0xff]
  %v90 = vld [vmem:[%s1 + $0x258] sm:$0xff]
  %v91 = vld [vmem:[%s1 + $0x260] sm:$0xff]
  %v92 = vld [vmem:[%s1 + $0x268] sm:$0xff]
  %v93 = vld [vmem:[%s1 + $0x270] sm:$0xff]
  %v94 = vld [vmem:[%s1 + $0x278] sm:$0xff]
  %v95 = vld [vmem:[%s1 + $0x280] sm:$0xff]
  %v96 = vld [vmem:[%s1 + $0x288] sm:$0xff]
  %v97 = vld [vmem:[%s1 + $0x290] sm:$0xff]
  %v98 = vld [vmem:[%s1 + $0x298] sm:$0xff]
  %v99 = vld [vmem:[%s1 + $0x2a0] sm:$0xff]
  %v100 = vld [vmem:[%s1 + $0x2a8] sm:$0xff]
  %v101 = vld [vmem:[%s1 + $0x2b0] sm:$0xff]
  %v102 = vld [vmem:[%s1 + $0x2b8] sm:$0xff]
  %v103 = vld [vmem:[%s1 + $0x2c0] sm:$0xff]
  %v104 = vld [vmem:[%s1 + $0x2c8] sm:$0xff]
  %v105 = vld [vmem:[%s1 + $0x2d0] sm:$0xff]
  %v106 = vld [vmem:[%s1 + $0x2d8] sm:$0xff]
  %v107 = vld [vmem:[%s1 + $0x2e0] sm:$0xff]
  %v108 = vld [vmem:[%s1 + $0x2e8] sm:$0xff]
  %v109 = vld [vmem:[%s1 + $0x2f0] sm:$0xff]
  %v110 = vld [vmem:[%s1 + $0x2f8] sm:$0xff]
  %v111 = vld [vmem:[%s1 + $0x300] sm:$0xff]
  %v112 = vld [vmem:[%s1 + $0x308] sm:$0xff]
  %v113 = vld [vmem:[%s1 + $0x310] sm:$0xff]
  %v114 = vld [vmem:[%s1 + $0x318] sm:$0xff]
  %v115 = vld [vmem:[%s1 + $0x320] sm:$0xff]
  %v116 = vld [vmem:[%s1 + $0x328] sm:$0xff]
  %v117 = vld [vmem:[%s1 + $0x330] sm:$0xff]
  %v118 = vld [vmem:[%s1 + $0x338] sm:$0xff]
  %v119 = vld [vmem:[%s1 + $0x340] sm:$0xff]
  %v120 = vld [vmem:[%s1 + $0x348] sm:$0xff]
  %v121 = vld [vmem:[%s1 + $0x350] sm:$0xff]
  %v122 = vld [vmem:[%s1 + $0x358] sm:$0xff]
  %v123 = vld [vmem:[%s1 + $0x360] sm:$0xff]
  %v124 = vld [vmem:[%s1 + $0x368] sm:$0xff]
  %v125 = vld [vmem:[%s1 + $0x370] sm:$0xff]
  %v126 = vld [vmem:[%s1 + $0x378] sm:$0xff]
  %v127 = vld [vmem:[%s1 + $0x380] sm:$0xff]
  %v128 = vld [vmem:[%s1 + $0x388] sm:$0xff]
  %v129 = vld [vmem:[%s1 + $0x390] sm:$0xff]
  %v130 = vld [vmem:[%s1 + $0x398] sm:$0xff]
  %v131 = vld [vmem:[%s1 + $0x3a0] sm:$0xff]
  %v132 = vld [vmem:[%s1 + $0x3a8] sm:$0xff]
  %v133 = vld [vmem:[%s1 + $0x3b0] sm:$0xff]
  %v134 = vld [vmem:[%s1 + $0x3b8] sm:$0xff]
  %v135 = vld [vmem:[%s1 + $0x3c0] sm:$0xff]
  %v136 = vld [vmem:[%s1 + $0x3c8] sm:$0xff]
  %v137 = vld [vmem:[%s1 + $0x3d0] sm:$0xff]
  %v138 = vld [vmem:[%s1 + $0x3d8] sm:$0xff]
  %v139 = vld [vmem:[%s1 + $0x3e0] sm:$0xff]
  %v140 = vld [vmem:[%s1 + $0x3e8] sm:$0xff]
  %v141 = vld [vmem:[%s1 + $0x3f0] sm:$0xff]
  %v142 = vld [vmem:[%s1 + $0x3f8] sm:$0xff]
  %v143 = vld [vmem:[%s1 + $0x400] sm:$0xff]
  %v144 = vld [vmem:[%s1 + $0x408] sm:$0xff]
  %v145 = vld [vmem:[%s1 + $0x410] sm:$0xff]
  %v146 = vld [vmem:[%s1 + $0x418] sm:$0xff]
  %v147 = vld [vmem:[%s1 + $0x420] sm:$0xff]
  %v148 = vld [vmem:[%s1 + $0x428] sm:$0xff]
  %v149 = vld [vmem:[%s1 + $0x430] sm:$0xff]
  %v150 = vld [vmem:[%s1 + $0x438] sm:$0xff]
  %v151 = vld [vmem:[%s1 + $0x440] sm:$0xff]
  %v152 = vld [vmem:[%s1 + $0x448] sm:$0xff]
  %v153 = vld [vmem:[%s1 + $0x450] sm:$0xff]
  %v154 = vld [vmem:[%s1 + $0x458] sm:$0xff]
  %v155 = vld [vmem:[%s1 + $0x460] sm:$0xff]
  %v156 = vld [vmem:[%s1 + $0x468] sm:$0xff]
  %v157 = vld [vmem:[%s1 + $0x470] sm:$0xff]
  %v158 = vld [vmem:[%s1 + $0x478] sm:$0xff]
  %v159 = vld [vmem:[%s1 + $0x480] sm:$0xff]
  %v160 = vld [vmem:[%s1 + $0x488] sm:$0xff]
  %v161 = vld [vmem:[%s1 + $0x490] sm:$0xff]
  %v162 = vld [vmem:[%s1 + $0x498] sm:$0xff]
  %v163 = vld [vmem:[%s1 + $0x4a0] sm:$0xff]
  %v164 = vld [vmem:[%s1 + $0x4a8] sm:$0xff]
  %v165 = vld [vmem:[%s1 + $0x4b0] sm:$0xff]
  %v166 = vld [vmem:[%s1 + $0x4b8] sm:$0xff]
  %v167 = vld [vmem:[%s1 + $0x4c0] sm:$0xff]
  %v168 = vld [vmem:[%s1 + $0x4c8] sm:$0xff]
  %v169 = vld [vmem:[%s1 + $0x4d0] sm:$0xff]
  %v170 = vld [vmem:[%s1 + $0x4d8] sm:$0xff]
  %v171 = vld [vmem:[%s1 + $0x4e0] sm:$0xff]
  %v172 = vld [vmem:[%s1 + $0x4e8] sm:$0xff]
  %v173 = vld [vmem:[%s1 + $0x4f0] sm:$0xff]
  %v174 = vld [vmem:[%s1 + $0x4f8] sm:$0xff]
  %v175 = vld [vmem:[%s1 + $0x500] sm:$0xff]
  %v176 = vld [vmem:[%s1 + $0x508] sm:$0xff]
  %v177 = vld [vmem:[%s1 + $0x510] sm:$0xff]
  %v178 = vld [vmem:[%s1 + $0x518] sm:$0xff]
  %v179 = vld [vmem:[%s1 + $0x520] sm:$0xff]
  %v180 = vld [vmem:[%s1 + $0x528] sm:$0xff]
  %v181 = vld [vmem:[%s1 + $0x530] sm:$0xff]
  %v182 = vld [vmem:[%s1 + $0x538] sm:$0xff]
  %v183 = vld [vmem:[%s1 + $0x540] sm:$0xff]
  %v184 = vld [vmem:[%s1 + $0x548] sm:$0xff]
  %v185 = vld [vmem:[%s1 + $0x550] sm:$0xff]
  %v186 = vld [vmem:[%s1 + $0x558] sm:$0xff]
  %v187 = vld [vmem:[%s1 + $0x560] sm:$0xff]
  %v188 = vld [vmem:[%s1 + $0x568] sm:$0xff]
  %v189 = vld [vmem:[%s1 + $0x570] sm:$0xff]
  %v190 = vld [vmem:[%s1 + $0x578] sm:$0xff]
  %v191 = vld [vmem:[%s1 + $0x580] sm:$0xff]
  %v192 = vld [vmem:[%s1 + $0x588] sm:$0xff]
  %v193 = vld [vmem:[%s1 + $0x590] sm:$0xff]
  %v194 = vld [vmem:[%s1 + $0x598] sm:$0xff]
  %v195 = vld [vmem:[%s1 + $0x5a0] sm:$0xff]
  %v196 = vld [vmem:[%s1 + $0x5a8] sm:$0xff]
  %v197 = vld [vmem:[%s1 + $0x5b0] sm:$0xff]
  %v198 = vld [vmem:[%s1 + $0x5b8] sm:$0xff]
  %v199 = vld [vmem:[%s1 + $0x5c0] sm:$0xff]
  %v200 = vld [vmem:[%s1 + $0x5c8] sm:$0xff]
  %v201 = vld [vmem:[%s1 + $0x5d0] sm:$0xff]
  %v202 = vld [vmem:[%s1 + $0x5d8] sm:$0xff]
  %v203 = vld [vmem:[%s1 + $0x5e0] sm:$0xff]
  %v204 = vld [vmem:[%s1 + $0x5e8] sm:$0xff]
  %v205 = vld [vmem:[%s1 + $0x5f0] sm:$0xff]
  %v206 = vld [vmem:[%s1 + $0x5f8] sm:$0xff]
  %v207 = vld [vmem:[%s1 + $0x600] sm:$0xff]
  %v208 = vld [vmem:[%s1 + $0x608] sm:$0xff]
  %v209 = vld [vmem:[%s1 + $0x610] sm:$0xff]
  %v210 = vld [vmem:[%s1 + $0x618] sm:$0xff]
  %v211 = vld [vmem:[%s1 + $0x620] sm:$0xff]
  %v212 = vld [vmem:[%s1 + $0x628] sm:$0xff]
  %v213 = vld [vmem:[%s1 + $0x630] sm:$0xff]
  %v214 = vld [vmem:[%s1 + $0x638] sm:$0xff]
  %v215 = vld [vmem:[%s1 + $0x640] sm:$0xff]
  %v216 = vld [vmem:[%s1 + $0x648] sm:$0xff]
  %v217 = vld [vmem:[%s1 + $0x650] sm:$0xff]
  %v218 = vld [vmem:[%s1 + $0x658] sm:$0xff]
  %v219 = vld [vmem:[%s1 + $0x660] sm:$0xff]
  %v220 = vld [vmem:[%s1 + $0x668] sm:$0xff]
  %v221 = vld [vmem:[%s1 + $0x670] sm:$0xff]
  %v222 = vld [vmem:[%s1 + $0x678] sm:$0xff]
  %v223 = vld [vmem:[%s1 + $0x680] sm:$0xff]
  %v224 = vld [vmem:[%s1 + $0x688] sm:$0xff]
  %v225 = vld [vmem:[%s1 + $0x690] sm:$0xff]
  %v226 = vld [vmem:[%s1 + $0x698] sm:$0xff]
  %v227 = vld [vmem:[%s1 + $0x6a0] sm:$0xff]
  %v228 = vld [vmem:[%s1 + $0x6a8] sm:$0xff]
  %v229 = vld [vmem:[%s1 + $0x6b0] sm:$0xff]
  %v230 = vld [vmem:[%s1 + $0x6b8] sm:$0xff]
  %v231 = vld [vmem:[%s1 + $0x6c0] sm:$0xff]
  %v232 = vld [vmem:[%s1 + $0x6c8] sm:$0xff]
  %v233 = vld [vmem:[%s1 + $0x6d0] sm:$0xff]
  %v234 = vld [vmem:[%s1 + $0x6d8] sm:$0xff]
  %v235 = vld [vmem:[%s1 + $0x6e0] sm:$0xff]
  %v236 = vld [vmem:[%s1 + $0x6e8] sm:$0xff]
  %v237 = vld [vmem:[%s1 + $0x6f0] sm:$0xff]
  %v238 = vld [vmem:[%s1 + $0x6f8] sm:$0xff]
  %v239 = vld [vmem:[%s1 + $0x700] sm:$0xff]
  %v240 = vld [vmem:[%s1 + $0x708] sm:$0xff]
  %v241 = vld [vmem:[%s1 + $0x710] sm:$0xff]
  %v242 = vld [vmem:[%s1 + $0x718] sm:$0xff]
  %v243 = vld [vmem:[%s1 + $0x720] sm:$0xff]
  %v244 = vld [vmem:[%s1 + $0x728] sm:$0xff]
  %v245 = vld [vmem:[%s1 + $0x730] sm:$0xff]
  %v246 = vld [vmem:[%s1 + $0x738] sm:$0xff]
  %v247 = vld [vmem:[%s1 + $0x740] sm:$0xff]
  %v248 = vld [vmem:[%s1 + $0x748] sm:$0xff]
  %v249 = vld [vmem:[%s1 + $0x750] sm:$0xff]
  %v250 = vld [vmem:[%s1 + $0x758] sm:$0xff]
  %v251 = vld [vmem:[%s1 + $0x760] sm:$0xff]
  %v252 = vld [vmem:[%s1 + $0x768] sm:$0xff]
  %v253 = vld [vmem:[%s1 + $0x770] sm:$0xff]
  %v254 = vld [vmem:[%s1 + $0x778] sm:$0xff]
  %v255 = vld [vmem:[%s1 + $0x780] sm:$0xff]
  %v256 = vld [vmem:[%s1 + $0x788] sm:$0xff]
  %v257 = vld [vmem:[%s1 + $0x790] sm:$0xff]
  %v258 = vld [vmem:[%s1 + $0x798] sm:$0xff]
  %v259 = vld [vmem:[%s1 + $0x7a0] sm:$0xff]
  %v260 = vld [vmem:[%s1 + $0x7a8] sm:$0xff]
  %v261 = vld [vmem:[%s1 + $0x7b0] sm:$0xff]
  %v262 = vld [vmem:[%s1 + $0x7b8] sm:$0xff]
  %v263 = vld [vmem:[%s1 + $0x7c0] sm:$0xff]
  %v264 = vld [vmem:[%s1 + $0x7c8] sm:$0xff]
  %v265 = vld [vmem:[%s1 + $0x7d0] sm:$0xff]
  %v266 = vld [vmem:[%s1 + $0x7d8] sm:$0xff]
  %v267 = vld [vmem:[%s1 + $0x7e0] sm:$0xff]
  %v268 = vld [vmem:[%s1 + $0x7e8] sm:$0xff]
  %v269 = vld [vmem:[%s1 + $0x7f0] sm:$0xff]
  %v270 = vld [vmem:[%s1 + $0x7f8] sm:$0xff]
  %v271 = vld [vmem:[%s1 + $0x800] sm:$0xff]
  %v272 = vld [vmem:[%s1 + $0x808] sm:$0xff]
  %v273 = vld [vmem:[%s1 + $0x810] sm:$0xff]
  %v274 = vld [vmem:[%s1 + $0x818] sm:$0xff]
  %v275 = vld [vmem:[%s1 + $0x820] sm:$0xff]
  %v276 = vld [vmem:[%s1 + $0x828] sm:$0xff]
  %v277 = vld [vmem:[%s1 + $0x830] sm:$0xff]
  %v278 = vld [vmem:[%s1 + $0x838] sm:$0xff]
  %v279 = vld [vmem:[%s1 + $0x840] sm:$0xff]
  %v280 = vld [vmem:[%s1 + $0x848] sm:$0xff]
  %v281 = vld [vmem:[%s1 + $0x850] sm:$0xff]
  %v282 = vld [vmem:[%s1 + $0x858] sm:$0xff]
  %v283 = vld [vmem:[%s1 + $0x860] sm:$0xff]
  %v284 = vld [vmem:[%s1 + $0x868] sm:$0xff]
  %v285 = vld [vmem:[%s1 + $0x870] sm:$0xff]
  %v286 = vld [vmem:[%s1 + $0x878] sm:$0xff]
  %v287 = vld [vmem:[%s1 + $0x880] sm:$0xff]
  %v288 = vld [vmem:[%s1 + $0x888] sm:$0xff]
  %v289 = vld [vmem:[%s1 + $0x890] sm:$0xff]
  %v290 = vld [vmem:[%s1 + $0x898] sm:$0xff]
  %v291 = vld [vmem:[%s1 + $0x8a0] sm:$0xff]
  %v292 = vld [vmem:[%s1 + $0x8a8] sm:$0xff]
  %v293 = vld [vmem:[%s1 + $0x8b0] sm:$0xff]
  %v294 = vld [vmem:[%s1 + $0x8b8] sm:$0xff]
  %v295 = vld [vmem:[%s1 + $0x8c0] sm:$0xff]
  %v296 = vld [vmem:[%s1 + $0x8c8] sm:$0xff]
  %v297 = vld [vmem:[%s1 + $0x8d0] sm:$0xff]
  %v298 = vld [vmem:[%s1 + $0x8d8] sm:$0xff]
  %v299 = vld [vmem:[%s1 + $0x8e0] sm:$0xff]
  %v300 = vld [vmem:[%s1 + $0x8e8] sm:$0xff]
  %v301 = vld [vmem:[%s1 + $0x8f0] sm:$0xff]
  %v302 = vld [vmem:[%s1 + $0x8f8] sm:$0xff]
  %v303 = vld [vmem:[%s1 + $0x900] sm:$0xff]
  %v304 = vld [vmem:[%s1 + $0x908] sm:$0xff]
  %v305 = vld [vmem:[%s1 + $0x910] sm:$0xff]
  %v306 = vld [vmem:[%s1 + $0x918] sm:$0xff]
  %v307 = vld [vmem:[%s1 + $0x920] sm:$0xff]
  %v308 = vld [vmem:[%s1 + $0x928] sm:$0xff]
  %v309 = vld [vmem:[%s1 + $0x930] sm:$0xff]
  %v310 = vld [vmem:[%s1 + $0x938] sm:$0xff]
  %v311 = vld [vmem:[%s1 + $0x940] sm:$0xff]
  %v312 = vld [vmem:[%s1 + $0x948] sm:$0xff]
  %v313 = vld [vmem:[%s1 + $0x950] sm:$0xff]
  %v314 = vld [vmem:[%s1 + $0x958] sm:$0xff]
  %v315 = vld [vmem:[%s1 + $0x960] sm:$0xff]
  %v316 = vld [vmem:[%s1 + $0x968] sm:$0xff]
  %v317 = vld [vmem:[%s1 + $0x970] sm:$0xff]
  %v318 = vld [vmem:[%s1 + $0x978] sm:$0xff]
  %v319 = vld [vmem:[%s1 + $0x980] sm:$0xff]
  %v320 = vld [vmem:[%s1 + $0x988] sm:$0xff]
  %v321 = vld [vmem:[%s1 + $0x990] sm:$0xff]
  %v322 = vld [vmem:[%s1 + $0x998] sm:$0xff]
  %v323 = vld [vmem:[%s1 + $0x9a0] sm:$0xff]
  %v324 = vld [vmem:[%s1 + $0x9a8] sm:$0xff]
  %v325 = vld [vmem:[%s1 + $0x9b0] sm:$0xff]
  %v326 = vld [vmem:[%s1 + $0x9b8] sm:$0xff]
  %v327 = vld [vmem:[%s1 + $0x9c0] sm:$0xff]
  %v328 = vld [vmem:[%s1 + $0x9c8] sm:$0xff]
  %v329 = vld [vmem:[%s1 + $0x9d0] sm:$0xff]
  %v330 = vld [vmem:[%s1 + $0x9d8] sm:$0xff]
  %v331 = vld [vmem:[%s1 + $0x9e0] sm:$0xff]
  %v332 = vld [vmem:[%s1 + $0x9e8] sm:$0xff]
  %v333 = vld [vmem:[%s1 + $0x9f0] sm:$0xff]
  %v334 = vld [vmem:[%s1 + $0x9f8] sm:$0xff]
  %v335 = vld [vmem:[%s1 + $0xa00] sm:$0xff]
  %v336 = vld [vmem:[%s1 + $0xa08] sm:$0xff]
  %v337 = vld [vmem:[%s1 + $0xa10] sm:$0xff]
  %v338 = vld [vmem:[%s1 + $0xa18] sm:$0xff]
  %v339 = vld [vmem:[%s1 + $0xa20] sm:$0xff]
  %v340 = vld [vmem:[%s1 + $0xa28] sm:$0xff]
  %v341 = vld [vmem:[%s1 + $0xa30] sm:$0xff]
  %v342 = vld [vmem:[%s1 + $0xa38] sm:$0xff]
  %v343 = vld [vmem:[%s1 + $0xa40] sm:$0xff]
  %v344 = vld [vmem:[%s1 + $0xa48] sm:$0xff]
  %v345 = vld [vmem:[%s1 + $0xa50] sm:$0xff]
  %v346 = vld [vmem:[%s1 + $0xa58] sm:$0xff]
  %v347 = vld [vmem:[%s1 + $0xa60] sm:$0xff]
  %v348 = vld [vmem:[%s1 + $0xa68] sm:$0xff]
  %v349 = vld [vmem:[%s1 + $0xa70] sm:$0xff]
  %v350 = vld [vmem:[%s1 + $0xa78] sm:$0xff]
  %v351 = vld [vmem:[%s1 + $0xa80] sm:$0xff]
  %v352 = vld [vmem:[%s1 + $0xa88] sm:$0xff]
  %v353 = vld [vmem:[%s1 + $0xa90] sm:$0xff]
  %v354 = vld [vmem:[%s1 + $0xa98] sm:$0xff]
  %v355 = vld [vmem:[%s1 + $0xaa0] sm:$0xff]
  %v356 = vld [vmem:[%s1 + $0xaa8] sm:$0xff]
  %v357 = vld [vmem:[%s1 + $0xab0] sm:$0xff]
  %v358 = vld [vmem:[%s1 + $0xab8] sm:$0xff]
  %v359 = vld [vmem:[%s1 + $0xac0] sm:$0xff]
  %v360 = vld [vmem:[%s1 + $0xac8] sm:$0xff]
  %v361 = vld [vmem:[%s1 + $0xad0] sm:$0xff]
  %v362 = vld [vmem:[%s1 + $0xad8] sm:$0xff]
  %v363 = vld [vmem:[%s1 + $0xae0] sm:$0xff]
  %v364 = vld [vmem:[%s1 + $0xae8] sm:$0xff]
  %v365 = vld [vmem:[%s1 + $0xaf0] sm:$0xff]
  %v366 = vld [vmem:[%s1 + $0xaf8] sm:$0xff]
  %v367 = vld [vmem:[%s1 + $0xb00] sm:$0xff]
  %v368 = vld [vmem:[%s1 + $0xb08] sm:$0xff]
  %v369 = vld [vmem:[%s1 + $0xb10] sm:$0xff]
  %v370 = vld [vmem:[%s1 + $0xb18] sm:$0xff]
  %v371 = vld [vmem:[%s1 + $0xb20] sm:$0xff]
  %v372 = vld [vmem:[%s1 + $0xb28] sm:$0xff]
  %v373 = vld [vmem:[%s1 + $0xb30] sm:$0xff]
  %v374 = vld [vmem:[%s1 + $0xb38] sm:$0xff]
  %v375 = vld [vmem:[%s1 + $0xb40] sm:$0xff]
  %v376 = vld [vmem:[%s1 + $0xb48] sm:$0xff]
  %v377 = vld [vmem:[%s1 + $0xb50] sm:$0xff]
  %v378 = vld [vmem:[%s1 + $0xb58] sm:$0xff]
  %v379 = vld [vmem:[%s1 + $0xb60] sm:$0xff]
  %v380 = vld [vmem:[%s1 + $0xb68] sm:$0xff]
  %v381 = vld [vmem:[%s1 + $0xb70] sm:$0xff]
  %v382 = vld [vmem:[%s1 + $0xb78] sm:$0xff]
  %v383 = vld [vmem:[%s1 + $0xb80] sm:$0xff]
  %v384 = vld [vmem:[%s1 + $0xb88] sm:$0xff]
  %v385 = vld [vmem:[%s1 + $0xb90] sm:$0xff]
  %v386 = vld [vmem:[%s1 + $0xb98] sm:$0xff]
  %v387 = vld [vmem:[%s1 + $0xba0] sm:$0xff]
  %v388 = vld [vmem:[%s1 + $0xba8] sm:$0xff]
  %v389 = vld [vmem:[%s1 + $0xbb0] sm:$0xff]
  %v390 = vld [vmem:[%s1 + $0xbb8] sm:$0xff]
  %v391 = vld [vmem:[%s1 + $0xbc0] sm:$0xff]
  %v392 = vld [vmem:[%s1 + $0xbc8] sm:$0xff]
  %v393 = vld [vmem:[%s1 + $0xbd0] sm:$0xff]
  %v394 = vld [vmem:[%s1 + $0xbd8] sm:$0xff]
  %v395 = vld [vmem:[%s1 + $0xbe0] sm:$0xff]
  %v396 = vld [vmem:[%s1 + $0xbe8] sm:$0xff]
  %v397 = vld [vmem:[%s1 + $0xbf0] sm:$0xff]
  %v398 = vld [vmem:[%s1 + $0xbf8] sm:$0xff]
  %v399 = vld [vmem:[%s1 + $0xc00] sm:$0xff]
  %v400 = vld [vmem:[%s1 + $0xc08] sm:$0xff]
  %v401 = vld [vmem:[%s1 + $0xc10] sm:$0xff]
  %v402 = vld [vmem:[%s1 + $0xc18] sm:$0xff]
  %v403 = vld [vmem:[%s1 + $0xc20] sm:$0xff]
  %v404 = vld [vmem:[%s1 + $0xc28] sm:$0xff]
  %v405 = vld [vmem:[%s1 + $0xc30] sm:$0xff]
  %v406 = vld [vmem:[%s1 + $0xc38] sm:$0xff]
  %v407 = vld [vmem:[%s1 + $0xc40] sm:$0xff]
  %v408 = vld [vmem:[%s1 + $0xc48] sm:$0xff]
  %v409 = vld [vmem:[%s1 + $0xc50] sm:$0xff]
  %v410 = vld [vmem:[%s1 + $0xc58] sm:$0xff]
  %v411 = vld [vmem:[%s1 + $0xc60] sm:$0xff]
  %v412 = vld [vmem:[%s1 + $0xc68] sm:$0xff]
  %v413 = vld [vmem:[%s1 + $0xc70] sm:$0xff]
  %v414 = vld [vmem:[%s1 + $0xc78] sm:$0xff]
  %v415 = vld [vmem:[%s1 + $0xc80] sm:$0xff]
  %v416 = vld [vmem:[%s1 + $0xc88] sm:$0xff]
  %v417 = vld [vmem:[%s1 + $0xc90] sm:$0xff]
  %v418 = vld [vmem:[%s1 + $0xc98] sm:$0xff]
  %v419 = vld [vmem:[%s1 + $0xca0] sm:$0xff]
  %v420 = vld [vmem:[%s1 + $0xca8] sm:$0xff]
  %v421 = vld [vmem:[%s1 + $0xcb0] sm:$0xff]
  %v422 = vld [vmem:[%s1 + $0xcb8] sm:$0xff]
  %v423 = vld [vmem:[%s1 + $0xcc0] sm:$0xff]
  %v424 = vld [vmem:[%s1 + $0xcc8] sm:$0xff]
  %v425 = vld [vmem:[%s1 + $0xcd0] sm:$0xff]
  %v426 = vld [vmem:[%s1 + $0xcd8] sm:$0xff]
  %v427 = vld [vmem:[%s1 + $0xce0] sm:$0xff]
  %v428 = vld [vmem:[%s1 + $0xce8] sm:$0xff]
  %v429 = vld [vmem:[%s1 + $0xcf0] sm:$0xff]
  %v430 = vld [vmem:[%s1 + $0xcf8] sm:$0xff]
  %v431 = vld [vmem:[%s1 + $0xd00] sm:$0xff]
  %v432 = vld [vmem:[%s1 + $0xd08] sm:$0xff]
  %v433 = vld [vmem:[%s1 + $0xd10] sm:$0xff]
  %v434 = vld [vmem:[%s1 + $0xd18] sm:$0xff]
  %v435 = vld [vmem:[%s1 + $0xd20] sm:$0xff]
  %v436 = vld [vmem:[%s1 + $0xd28] sm:$0xff]
  %v437 = vld [vmem:[%s1 + $0xd30] sm:$0xff]
  %v438 = vld [vmem:[%s1 + $0xd38] sm:$0xff]
  %v439 = vld [vmem:[%s1 + $0xd40] sm:$0xff]
  %v440 = vld [vmem:[%s1 + $0xd48] sm:$0xff]
  %v441 = vld [vmem:[%s1 + $0xd50] sm:$0xff]
  %v442 = vld [vmem:[%s1 + $0xd58] sm:$0xff]
  %v443 = vld [vmem:[%s1 + $0xd60] sm:$0xff]
  %v444 = vld [vmem:[%s1 + $0xd68] sm:$0xff]
  %v445 = vld [vmem:[%s1 + $0xd70] sm:$0xff]
  %v446 = vld [vmem:[%s1 + $0xd78] sm:$0xff]
  %v447 = vld [vmem:[%s1 + $0xd80] sm:$0xff]
  %v448 = vld [vmem:[%s1 + $0xd88] sm:$0xff]
  %v449 = vld [vmem:[%s1 + $0xd90] sm:$0xff]
  %v450 = vld [vmem:[%s1 + $0xd98] sm:$0xff]
  %v451 = vld [vmem:[%s1 + $0xda0] sm:$0xff]
  %v452 = vld [vmem:[%s1 + $0xda8] sm:$0xff]
  %v453 = vld [vmem:[%s1 + $0xdb0] sm:$0xff]
  %v454 = vld [vmem:[%s1 + $0xdb8] sm:$0xff]
  %v455 = vld [vmem:[%s1 + $0xdc0] sm:$0xff]
  %v456 = vld [vmem:[%s1 + $0xdc8] sm:$0xff]
  %v457 = vld [vmem:[%s1 + $0xdd0] sm:$0xff]
  %v458 = vld [vmem:[%s1 + $0xdd8] sm:$0xff]
  %v459 = vld [vmem:[%s1 + $0xde0] sm:$0xff]
  %v460 = vld [vmem:[%s1 + $0xde8] sm:$0xff]
  %v461 = vld [vmem:[%s1 + $0xdf0] sm:$0xff]
  %v462 = vld [vmem:[%s1 + $0xdf8] sm:$0xff]
  %v463 = vld [vmem:[%s1 + $0xe00] sm:$0xff]
  %v464 = vld [vmem:[%s1 + $0xe08] sm:$0xff]
  %v465 = vld [vmem:[%s1 + $0xe10] sm:$0xff]
  %v466 = vld [vmem:[%s1 + $0xe18] sm:$0xff]
  %v467 = vld [vmem:[%s1 + $0xe20] sm:$0xff]
  %v468 = vld [vmem:[%s1 + $0xe28] sm:$0xff]
  %v469 = vld [vmem:[%s1 + $0xe30] sm:$0xff]
  %v470 = vld [vmem:[%s1 + $0xe38] sm:$0xff]
  %v471 = vld [vmem:[%s1 + $0xe40] sm:$0xff]
  %v472 = vld [vmem:[%s1 + $0xe48] sm:$0xff]
  %v473 = vld [vmem:[%s1 + $0xe50] sm:$0xff]
  %v474 = vld [vmem:[%s1 + $0xe58] sm:$0xff]
  %v475 = vld [vmem:[%s1 + $0xe60] sm:$0xff]
  %v476 = vld [vmem:[%s1 + $0xe68] sm:$0xff]
  %v477 = vld [vmem:[%s1 + $0xe70] sm:$0xff]
  %v478 = vld [vmem:[%s1 + $0xe78] sm:$0xff]
  %v479 = vld [vmem:[%s1 + $0xe80] sm:$0xff]
  %v480 = vld [vmem:[%s1 + $0xe88] sm:$0xff]
  %v481 = vld [vmem:[%s1 + $0xe90] sm:$0xff]
  %v482 = vld [vmem:[%s1 + $0xe98] sm:$0xff]
  %v483 = vld [vmem:[%s1 + $0xea0] sm:$0xff]
  %v484 = vld [vmem:[%s1 + $0xea8] sm:$0xff]
  %v485 = vld [vmem:[%s1 + $0xeb0] sm:$0xff]
  %v486 = vld [vmem:[%s1 + $0xeb8] sm:$0xff]
  %v487 = vld [vmem:[%s1 + $0xec0] sm:$0xff]
  %v488 = vld [vmem:[%s1 + $0xec8] sm:$0xff]
  %v489 = vld [vmem:[%s1 + $0xed0] sm:$0xff]
  %v490 = vld [vmem:[%s1 + $0xed8] sm:$0xff]
  %v491 = vld [vmem:[%s1 + $0xee0] sm:$0xff]
  %v492 = vld [vmem:[%s1 + $0xee8] sm:$0xff]
  %v493 = vld [vmem:[%s1 + $0xef0] sm:$0xff]
  %v494 = vld [vmem:[%s1 + $0xef8] sm:$0xff]
  %v495 = vld [vmem:[%s1 + $0xf00] sm:$0xff]
  %v496 = vld [vmem:[%s1 + $0xf08] sm:$0xff]
  %v497 = vld [vmem:[%s1 + $0xf10] sm:$0xff]
  %v498 = vld [vmem:[%s1 + $0xf18] sm:$0xff]
  %v499 = vld [vmem:[%s1 + $0xf20] sm:$0xff]
  %v500 = vld [vmem:[%s1 + $0xf28] sm:$0xff]
  %v501 = vld [vmem:[%s1 + $0xf30] sm:$0xff]
  %v502 = vld [vmem:[%s1 + $0xf38] sm:$0xff]
  %v503 = vld [vmem:[%s1 + $0xf40] sm:$0xff]
  %v504 = vld [vmem:[%s1 + $0xf48] sm:$0xff]
  %v505 = vld [vmem:[%s1 + $0xf50] sm:$0xff]
  %v506 = vld [vmem:[%s1 + $0xf58] sm:$0xff]
  %v507 = vld [vmem:[%s1 + $0xf60] sm:$0xff]
  %v508 = vld [vmem:[%s1 + $0xf68] sm:$0xff]
  %v509 = vld [vmem:[%s1 + $0xf70] sm:$0xff]
  %v510 = vld [vmem:[%s1 + $0xf78] sm:$0xff]
  %v511 = vld [vmem:[%s1 + $0xf80] sm:$0xff]
  %v512 = vld [vmem:[%s1 + $0xf88] sm:$0xff]
  %v513 = vld [vmem:[%s1 + $0xf90] sm:$0xff]
  %v514 = vld [vmem:[%s1 + $0xf98] sm:$0xff]
  %v515 = vld [vmem:[%s1 + $0xfa0] sm:$0xff]
  %v516 = vld [vmem:[%s1 + $0xfa8] sm:$0xff]
  %v517 = vld [vmem:[%s1 + $0xfb0] sm:$0xff]
  %v518 = vld [vmem:[%s1 + $0xfb8] sm:$0xff]
  %v519 = vld [vmem:[%s1 + $0xfc0] sm:$0xff]
  %v520 = vld [vmem:[%s1 + $0xfc8] sm:$0xff]
  %v521 = vld [vmem:[%s1 + $0xfd0] sm:$0xff]
  %v522 = vld [vmem:[%s1 + $0xfd8] sm:$0xff]
  %v523 = vld [vmem:[%s1 + $0xfe0] sm:$0xff]
  %v524 = vld [vmem:[%s1 + $0xfe8] sm:$0xff]
  %v525 = vld [vmem:[%s1 + $0xff0] sm:$0xff]
  %v526 = vld [vmem:[%s1 + $0xff8] sm:$0xff]
  %v527 = vld [vmem:[%s2] sm:$0xff]
  %v529 = vlaneseq
  %v530 = vshrl.u32 %v529, 7
  %v531 = vsub.s32 0, %v530
  %v532 = vrot.slane %v527, %v531
  %v533 = vlaneseq
  %v534 = vshrl.u32 %v533, 7
  %v535 = vsub.s32 1, %v534
  %v536 = vrot.slane %v527, %v535
  %v537 = vlaneseq
  %v538 = vshrl.u32 %v537, 7
  %v539 = vsub.s32 2, %v538
  %v540 = vrot.slane %v527, %v539
  %v541 = vlaneseq
  %v542 = vshrl.u32 %v541, 7
  %v543 = vsub.s32 3, %v542
  %v544 = vrot.slane %v527, %v543
  %v545 = vlaneseq
  %v546 = vshrl.u32 %v545, 7
  %v547 = vsub.s32 4, %v546
  %v548 = vrot.slane %v527, %v547
  %v549 = vlaneseq
  %v550 = vshrl.u32 %v549, 7
  %v551 = vsub.s32 5, %v550
  %v552 = vrot.slane %v527, %v551
  %v553 = vlaneseq
  %v554 = vshrl.u32 %v553, 7
  %v555 = vsub.s32 6, %v554
  %v556 = vrot.slane %v527, %v555
  %v557 = vlaneseq
  %v558 = vshrl.u32 %v557, 7
  %v559 = vsub.s32 7, %v558
  %v560 = vrot.slane %v527, %v559
  %v570 = vcombine.high %v14, %v14
  %v572 = vunpack.c.l.s4 1983009808
  %v573 = vunpack.c.0.s8 %v572
  %v574 = vlaneseq
  %v575 = vshrl.u32 %v574, 7
  %v576 = vsub.s32 %v573, %v575
  %v577 = vrot.slane %v14, %v576
  %v579 = vunpack.c.l.s4 1983009808
  %v580 = vunpack.c.0.s8 %v579
  %v581 = vlaneseq
  %v582 = vshrl.u32 %v581, 7
  %v583 = vsub.s32 %v580, %v582
  %v584 = vrot.slane %v570, %v583
  %v585 = vcombine.high %v577, %v577
  %v586 = vcombine.high %v584, %v584
  %591 = vmatprep.subr.mxu0 %v16
  %592 = vmatpush1.msra.mxu0 %v15
  %593 = vmatprep.subr.mxu0 %v24
  %594 = vmatpush1.msra.mxu0 %v23
  %595 = vmatprep.subr.mxu0 %v32
  %596 = vmatpush1.msra.mxu0 %v31
  %597 = vmatprep.subr.mxu0 %v40
  %598 = vmatpush1.msra.mxu0 %v39
  %599 = vmatprep.subr.mxu0 %v48
  %600 = vmatpush1.msra.mxu0 %v47
  %601 = vmatprep.subr.mxu0 %v56
  %602 = vmatpush1.msra.mxu0 %v55
  %603 = vmatprep.subr.mxu0 %v64
  %604 = vmatpush1.msra.mxu0 %v63
  %605 = vmatprep.subr.mxu0 %v72
  %606 = vmatpush1.msra.mxu0 %v71
  %607 = vmatprep.subr.mxu0 %v80
  %608 = vmatpush1.msra.mxu0 %v79
  %609 = vmatprep.subr.mxu0 %v88
  %610 = vmatpush1.msra.mxu0 %v87
  %611 = vmatprep.subr.mxu0 %v96
  %612 = vmatpush1.msra.mxu0 %v95
  %613 = vmatprep.subr.mxu0 %v104
  %614 = vmatpush1.msra.mxu0 %v103
  %615 = vmatprep.subr.mxu0 %v112
  %616 = vmatpush1.msra.mxu0 %v111
  %617 = vmatprep.subr.mxu0 %v120
  %618 = vmatpush1.msra.mxu0 %v119
  %619 = vmatprep.subr.mxu0 %v128
  %620 = vmatpush1.msra.mxu0 %v127
  %621 = vmatprep.subr.mxu0 %v136
  %622 = vmatpush1.msra.mxu0 %v135
  %623 = vmatprep.subr.mxu0 %v144
  %624 = vmatpush1.msra.mxu0 %v143
  %625 = vmatprep.subr.mxu0 %v152
  %626 = vmatpush1.msra.mxu0 %v151
  %627 = vmatprep.subr.mxu0 %v160
  %628 = vmatpush1.msra.mxu0 %v159
  %629 = vmatprep.subr.mxu0 %v168
  %630 = vmatpush1.msra.mxu0 %v167
  %631 = vmatprep.subr.mxu0 %v176
  %632 = vmatpush1.msra.mxu0 %v175
  %633 = vmatprep.subr.mxu0 %v184
  %634 = vmatpush1.msra.mxu0 %v183
  %635 = vmatprep.subr.mxu0 %v192
  %636 = vmatpush1.msra.mxu0 %v191
  %637 = vmatprep.subr.mxu0 %v200
  %638 = vmatpush1.msra.mxu0 %v199
  %639 = vmatprep.subr.mxu0 %v208
  %640 = vmatpush1.msra.mxu0 %v207
  %641 = vmatprep.subr.mxu0 %v216
  %642 = vmatpush1.msra.mxu0 %v215
  %643 = vmatprep.subr.mxu0 %v224
  %644 = vmatpush1.msra.mxu0 %v223
  %645 = vmatprep.subr.mxu0 %v232
  %646 = vmatpush1.msra.mxu0 %v231
  %647 = vmatprep.subr.mxu0 %v240
  %648 = vmatpush1.msra.mxu0 %v239
  %649 = vmatprep.subr.mxu0 %v248
  %650 = vmatpush1.msra.mxu0 %v247
  %651 = vmatprep.subr.mxu0 %v256
  %652 = vmatpush1.msra.mxu0 %v255
  %653 = vmatprep.subr.mxu0 %v264
  %654 = vmatpush1.msra.mxu0 %v263
  %655 = vmatprep.mubr.f32.mxu0 %v585
  %656 = vmatmul.mubr.f32.gmra.mrb[0].mxu0 %v577
  %v657 = vpop.f32.mrb[0].mxu0
  %v658 = vadd.f32 %v532, %v657
  %v659 = vpop.f32.mrb[0].mxu0
  %v660 = vadd.f32 %v536, %v659
  %661 = vdwg.mxu0
  %662 = vmatprep.subr.mxu0 %v272
  %663 = vmatpush1.msra.mxu0 %v271
  %664 = vmatprep.subr.mxu0 %v280
  %665 = vmatpush1.msra.mxu0 %v279
  %666 = vmatprep.subr.mxu0 %v288
  %667 = vmatpush1.msra.mxu0 %v287
  %668 = vmatprep.subr.mxu0 %v296
  %669 = vmatpush1.msra.mxu0 %v295
  %670 = vmatprep.subr.mxu0 %v304
  %671 = vmatpush1.msra.mxu0 %v303
  %672 = vmatprep.subr.mxu0 %v312
  %673 = vmatpush1.msra.mxu0 %v311
  %674 = vmatprep.subr.mxu0 %v320
  %675 = vmatpush1.msra.mxu0 %v319
  %676 = vmatprep.subr.mxu0 %v328
  %677 = vmatpush1.msra.mxu0 %v327
  %678 = vmatprep.subr.mxu0 %v336
  %679 = vmatpush1.msra.mxu0 %v335
  %680 = vmatprep.subr.mxu0 %v344
  %681 = vmatpush1.msra.mxu0 %v343
  %682 = vmatprep.subr.mxu0 %v352
  %683 = vmatpush1.msra.mxu0 %v351
  %684 = vmatprep.subr.mxu0 %v360
  %685 = vmatpush1.msra.mxu0 %v359
  %686 = vmatprep.subr.mxu0 %v368
  %687 = vmatpush1.msra.mxu0 %v367
  %688 = vmatprep.subr.mxu0 %v376
  %689 = vmatpush1.msra.mxu0 %v375
  %690 = vmatprep.subr.mxu0 %v384
  %691 = vmatpush1.msra.mxu0 %v383
  %692 = vmatprep.subr.mxu0 %v392
  %693 = vmatpush1.msra.mxu0 %v391
  %694 = vmatprep.subr.mxu0 %v400
  %695 = vmatpush1.msra.mxu0 %v399
  %696 = vmatprep.subr.mxu0 %v408
  %697 = vmatpush1.msra.mxu0 %v407
  %698 = vmatprep.subr.mxu0 %v416
  %699 = vmatpush1.msra.mxu0 %v415
  %700 = vmatprep.subr.mxu0 %v424
  %701 = vmatpush1.msra.mxu0 %v423
  %702 = vmatprep.subr.mxu0 %v432
  %703 = vmatpush1.msra.mxu0 %v431
  %704 = vmatprep.subr.mxu0 %v440
  %705 = vmatpush1.msra.mxu0 %v439
  %706 = vmatprep.subr.mxu0 %v448
  %707 = vmatpush1.msra.mxu0 %v447
  %708 = vmatprep.subr.mxu0 %v456
  %709 = vmatpush1.msra.mxu0 %v455
  %710 = vmatprep.subr.mxu0 %v464
  %711 = vmatpush1.msra.mxu0 %v463
  %712 = vmatprep.subr.mxu0 %v472
  %713 = vmatpush1.msra.mxu0 %v471
  %714 = vmatprep.subr.mxu0 %v480
  %715 = vmatpush1.msra.mxu0 %v479
  %716 = vmatprep.subr.mxu0 %v488
  %717 = vmatpush1.msra.mxu0 %v487
  %718 = vmatprep.subr.mxu0 %v496
  %719 = vmatpush1.msra.mxu0 %v495
  %720 = vmatprep.subr.mxu0 %v504
  %721 = vmatpush1.msra.mxu0 %v503
  %722 = vmatprep.subr.mxu0 %v512
  %723 = vmatpush1.msra.mxu0 %v511
  %724 = vmatprep.subr.mxu0 %v520
  %725 = vmatpush1.msra.mxu0 %v519
  %726 = vmatprep.mubr.f32.mxu0 %v586
  %727 = vmatmul.mubr.f32.gmra.mrb[0].mxu0 %v584
  %v728 = vpop.f32.mrb[0].mxu0
  %v729 = vadd.f32 %v658, %v728
  %v730 = vpop.f32.mrb[0].mxu0
  %v731 = vadd.f32 %v660, %v730
  %732 = vdwg.mxu0
  %733 = vmatprep.subr.mxu0 %v18
  %734 = vmatpush1.msra.mxu0 %v17
  %735 = vmatprep.subr.mxu0 %v26
  %736 = vmatpush1.msra.mxu0 %v25
  %737 = vmatprep.subr.mxu0 %v34
  %738 = vmatpush1.msra.mxu0 %v33
  %739 = vmatprep.subr.mxu0 %v42
  %740 = vmatpush1.msra.mxu0 %v41
  %741 = vmatprep.subr.mxu0 %v50
  %742 = vmatpush1.msra.mxu0 %v49
  %743 = vmatprep.subr.mxu0 %v58
  %744 = vmatpush1.msra.mxu0 %v57
  %745 = vmatprep.subr.mxu0 %v66
  %746 = vmatpush1.msra.mxu0 %v65
  %747 = vmatprep.subr.mxu0 %v74
  %748 = vmatpush1.msra.mxu0 %v73
  %749 = vmatprep.subr.mxu0 %v82
  %750 = vmatpush1.msra.mxu0 %v81
  %751 = vmatprep.subr.mxu0 %v90
  %752 = vmatpush1.msra.mxu0 %v89
  %753 = vmatprep.subr.mxu0 %v98
  %754 = vmatpush1.msra.mxu0 %v97
  %755 = vmatprep.subr.mxu0 %v106
  %756 = vmatpush1.msra.mxu0 %v105
  %757 = vmatprep.subr.mxu0 %v114
  %758 = vmatpush1.msra.mxu0 %v113
  %759 = vmatprep.subr.mxu0 %v122
  %760 = vmatpush1.msra.mxu0 %v121
  %761 = vmatprep.subr.mxu0 %v130
  %762 = vmatpush1.msra.mxu0 %v129
  %763 = vmatprep.subr.mxu0 %v138
  %764 = vmatpush1.msra.mxu0 %v137
  %765 = vmatprep.subr.mxu0 %v146
  %766 = vmatpush1.msra.mxu0 %v145
  %767 = vmatprep.subr.mxu0 %v154
  %768 = vmatpush1.msra.mxu0 %v153
  %769 = vmatprep.subr.mxu0 %v162
  %770 = vmatpush1.msra.mxu0 %v161
  %771 = vmatprep.subr.mxu0 %v170
  %772 = vmatpush1.msra.mxu0 %v169
  %773 = vmatprep.subr.mxu0 %v178
  %774 = vmatpush1.msra.mxu0 %v177
  %775 = vmatprep.subr.mxu0 %v186
  %776 = vmatpush1.msra.mxu0 %v185
  %777 = vmatprep.subr.mxu0 %v194
  %778 = vmatpush1.msra.mxu0 %v193
  %779 = vmatprep.subr.mxu0 %v202
  %780 = vmatpush1.msra.mxu0 %v201
  %781 = vmatprep.subr.mxu0 %v210
  %782 = vmatpush1.msra.mxu0 %v209
  %783 = vmatprep.subr.mxu0 %v218
  %784 = vmatpush1.msra.mxu0 %v217
  %785 = vmatprep.subr.mxu0 %v226
  %786 = vmatpush1.msra.mxu0 %v225
  %787 = vmatprep.subr.mxu0 %v234
  %788 = vmatpush1.msra.mxu0 %v233
  %789 = vmatprep.subr.mxu0 %v242
  %790 = vmatpush1.msra.mxu0 %v241
  %791 = vmatprep.subr.mxu0 %v250
  %792 = vmatpush1.msra.mxu0 %v249
  %793 = vmatprep.subr.mxu0 %v258
  %794 = vmatpush1.msra.mxu0 %v257
  %795 = vmatprep.subr.mxu0 %v266
  %796 = vmatpush1.msra.mxu0 %v265
  %797 = vmatprep.mubr.f32.mxu0 %v585
  %798 = vmatmul.mubr.f32.gmra.mrb[0].mxu0 %v577
  %v799 = vpop.f32.mrb[0].mxu0
  %v800 = vadd.f32 %v540, %v799
  %v801 = vpop.f32.mrb[0].mxu0
  %v802 = vadd.f32 %v544, %v801
  %803 = vdwg.mxu0
  %804 = vmatprep.subr.mxu0 %v274
  %805 = vmatpush1.msra.mxu0 %v273
  %806 = vmatprep.subr.mxu0 %v282
  %807 = vmatpush1.msra.mxu0 %v281
  %808 = vmatprep.subr.mxu0 %v290
  %809 = vmatpush1.msra.mxu0 %v289
  %810 = vmatprep.subr.mxu0 %v298
  %811 = vmatpush1.msra.mxu0 %v297
  %812 = vmatprep.subr.mxu0 %v306
  %813 = vmatpush1.msra.mxu0 %v305
  %814 = vmatprep.subr.mxu0 %v314
  %815 = vmatpush1.msra.mxu0 %v313
  %816 = vmatprep.subr.mxu0 %v322
  %817 = vmatpush1.msra.mxu0 %v321
  %818 = vmatprep.subr.mxu0 %v330
  %819 = vmatpush1.msra.mxu0 %v329
  %820 = vmatprep.subr.mxu0 %v338
  %821 = vmatpush1.msra.mxu0 %v337
  %822 = vmatprep.subr.mxu0 %v346
  %823 = vmatpush1.msra.mxu0 %v345
  %824 = vmatprep.subr.mxu0 %v354
  %825 = vmatpush1.msra.mxu0 %v353
  %826 = vmatprep.subr.mxu0 %v362
  %827 = vmatpush1.msra.mxu0 %v361
  %828 = vmatprep.subr.mxu0 %v370
  %829 = vmatpush1.msra.mxu0 %v369
  %830 = vmatprep.subr.mxu0 %v378
  %831 = vmatpush1.msra.mxu0 %v377
  %832 = vmatprep.subr.mxu0 %v386
  %833 = vmatpush1.msra.mxu0 %v385
  %834 = vmatprep.subr.mxu0 %v394
  %835 = vmatpush1.msra.mxu0 %v393
  %836 = vmatprep.subr.mxu0 %v402
  %837 = vmatpush1.msra.mxu0 %v401
  %838 = vmatprep.subr.mxu0 %v410
  %839 = vmatpush1.msra.mxu0 %v409
  %840 = vmatprep.subr.mxu0 %v418
  %841 = vmatpush1.msra.mxu0 %v417
  %842 = vmatprep.subr.mxu0 %v426
  %843 = vmatpush1.msra.mxu0 %v425
  %844 = vmatprep.subr.mxu0 %v434
  %845 = vmatpush1.msra.mxu0 %v433
  %846 = vmatprep.subr.mxu0 %v442
  %847 = vmatpush1.msra.mxu0 %v441
  %848 = vmatprep.subr.mxu0 %v450
  %849 = vmatpush1.msra.mxu0 %v449
  %850 = vmatprep.subr.mxu0 %v458
  %851 = vmatpush1.msra.mxu0 %v457
  %852 = vmatprep.subr.mxu0 %v466
  %853 = vmatpush1.msra.mxu0 %v465
  %854 = vmatprep.subr.mxu0 %v474
  %855 = vmatpush1.msra.mxu0 %v473
  %856 = vmatprep.subr.mxu0 %v482
  %857 = vmatpush1.msra.mxu0 %v481
  %858 = vmatprep.subr.mxu0 %v490
  %859 = vmatpush1.msra.mxu0 %v489
  %860 = vmatprep.subr.mxu0 %v498
  %861 = vmatpush1.msra.mxu0 %v497
  %862 = vmatprep.subr.mxu0 %v506
  %863 = vmatpush1.msra.mxu0 %v505
  %864 = vmatprep.subr.mxu0 %v514
  %865 = vmatpush1.msra.mxu0 %v513
  %866 = vmatprep.subr.mxu0 %v522
  %867 = vmatpush1.msra.mxu0 %v521
  %868 = vmatprep.mubr.f32.mxu0 %v586
  %869 = vmatmul.mubr.f32.gmra.mrb[0].mxu0 %v584
  %v870 = vpop.f32.mrb[0].mxu0
  %v871 = vadd.f32 %v800, %v870
  %v872 = vpop.f32.mrb[0].mxu0
  %v873 = vadd.f32 %v802, %v872
  %874 = vdwg.mxu0
  %875 = vmatprep.subr.mxu0 %v20
  %876 = vmatpush1.msra.mxu0 %v19
  %877 = vmatprep.subr.mxu0 %v28
  %878 = vmatpush1.msra.mxu0 %v27
  %879 = vmatprep.subr.mxu0 %v36
  %880 = vmatpush1.msra.mxu0 %v35
  %881 = vmatprep.subr.mxu0 %v44
  %882 = vmatpush1.msra.mxu0 %v43
  %883 = vmatprep.subr.mxu0 %v52
  %884 = vmatpush1.msra.mxu0 %v51
  %885 = vmatprep.subr.mxu0 %v60
  %886 = vmatpush1.msra.mxu0 %v59
  %887 = vmatprep.subr.mxu0 %v68
  %888 = vmatpush1.msra.mxu0 %v67
  %889 = vmatprep.subr.mxu0 %v76
  %890 = vmatpush1.msra.mxu0 %v75
  %891 = vmatprep.subr.mxu0 %v84
  %892 = vmatpush1.msra.mxu0 %v83
  %893 = vmatprep.subr.mxu0 %v92
  %894 = vmatpush1.msra.mxu0 %v91
  %895 = vmatprep.subr.mxu0 %v100
  %896 = vmatpush1.msra.mxu0 %v99
  %897 = vmatprep.subr.mxu0 %v108
  %898 = vmatpush1.msra.mxu0 %v107
  %899 = vmatprep.subr.mxu0 %v116
  %900 = vmatpush1.msra.mxu0 %v115
  %901 = vmatprep.subr.mxu0 %v124
  %902 = vmatpush1.msra.mxu0 %v123
  %903 = vmatprep.subr.mxu0 %v132
  %904 = vmatpush1.msra.mxu0 %v131
  %905 = vmatprep.subr.mxu0 %v140
  %906 = vmatpush1.msra.mxu0 %v139
  %907 = vmatprep.subr.mxu0 %v148
  %908 = vmatpush1.msra.mxu0 %v147
  %909 = vmatprep.subr.mxu0 %v156
  %910 = vmatpush1.msra.mxu0 %v155
  %911 = vmatprep.subr.mxu0 %v164
  %912 = vmatpush1.msra.mxu0 %v163
  %913 = vmatprep.subr.mxu0 %v172
  %914 = vmatpush1.msra.mxu0 %v171
  %915 = vmatprep.subr.mxu0 %v180
  %916 = vmatpush1.msra.mxu0 %v179
  %917 = vmatprep.subr.mxu0 %v188
  %918 = vmatpush1.msra.mxu0 %v187
  %919 = vmatprep.subr.mxu0 %v196
  %920 = vmatpush1.msra.mxu0 %v195
  %921 = vmatprep.subr.mxu0 %v204
  %922 = vmatpush1.msra.mxu0 %v203
  %923 = vmatprep.subr.mxu0 %v212
  %924 = vmatpush1.msra.mxu0 %v211
  %925 = vmatprep.subr.mxu0 %v220
  %926 = vmatpush1.msra.mxu0 %v219
  %927 = vmatprep.subr.mxu0 %v228
  %928 = vmatpush1.msra.mxu0 %v227
  %929 = vmatprep.subr.mxu0 %v236
  %930 = vmatpush1.msra.mxu0 %v235
  %931 = vmatprep.subr.mxu0 %v244
  %932 = vmatpush1.msra.mxu0 %v243
  %933 = vmatprep.subr.mxu0 %v252
  %934 = vmatpush1.msra.mxu0 %v251
  %935 = vmatprep.subr.mxu0 %v260
  %936 = vmatpush1.msra.mxu0 %v259
  %937 = vmatprep.subr.mxu0 %v268
  %938 = vmatpush1.msra.mxu0 %v267
  %939 = vmatprep.mubr.f32.mxu0 %v585
  %940 = vmatmul.mubr.f32.gmra.mrb[0].mxu0 %v577
  %v941 = vpop.f32.mrb[0].mxu0
  %v942 = vadd.f32 %v548, %v941
  %v943 = vpop.f32.mrb[0].mxu0
  %v944 = vadd.f32 %v552, %v943
  %945 = vdwg.mxu0
  %946 = vmatprep.subr.mxu0 %v276
  %947 = vmatpush1.msra.mxu0 %v275
  %948 = vmatprep.subr.mxu0 %v284
  %949 = vmatpush1.msra.mxu0 %v283
  %950 = vmatprep.subr.mxu0 %v292
  %951 = vmatpush1.msra.mxu0 %v291
  %952 = vmatprep.subr.mxu0 %v300
  %953 = vmatpush1.msra.mxu0 %v299
  %954 = vmatprep.subr.mxu0 %v308
  %955 = vmatpush1.msra.mxu0 %v307
  %956 = vmatprep.subr.mxu0 %v316
  %957 = vmatpush1.msra.mxu0 %v315
  %958 = vmatprep.subr.mxu0 %v324
  %959 = vmatpush1.msra.mxu0 %v323
  %960 = vmatprep.subr.mxu0 %v332
  %961 = vmatpush1.msra.mxu0 %v331
  %962 = vmatprep.subr.mxu0 %v340
  %963 = vmatpush1.msra.mxu0 %v339
  %964 = vmatprep.subr.mxu0 %v348
  %965 = vmatpush1.msra.mxu0 %v347
  %966 = vmatprep.subr.mxu0 %v356
  %967 = vmatpush1.msra.mxu0 %v355
  %968 = vmatprep.subr.mxu0 %v364
  %969 = vmatpush1.msra.mxu0 %v363
  %970 = vmatprep.subr.mxu0 %v372
  %971 = vmatpush1.msra.mxu0 %v371
  %972 = vmatprep.subr.mxu0 %v380
  %973 = vmatpush1.msra.mxu0 %v379
  %974 = vmatprep.subr.mxu0 %v388
  %975 = vmatpush1.msra.mxu0 %v387
  %976 = vmatprep.subr.mxu0 %v396
  %977 = vmatpush1.msra.mxu0 %v395
  %978 = vmatprep.subr.mxu0 %v404
  %979 = vmatpush1.msra.mxu0 %v403
  %980 = vmatprep.subr.mxu0 %v412
  %981 = vmatpush1.msra.mxu0 %v411
  %982 = vmatprep.subr.mxu0 %v420
  %983 = vmatpush1.msra.mxu0 %v419
  %984 = vmatprep.subr.mxu0 %v428
  %985 = vmatpush1.msra.mxu0 %v427
  %986 = vmatprep.subr.mxu0 %v436
  %987 = vmatpush1.msra.mxu0 %v435
  %988 = vmatprep.subr.mxu0 %v444
  %989 = vmatpush1.msra.mxu0 %v443
  %990 = vmatprep.subr.mxu0 %v452
  %991 = vmatpush1.msra.mxu0 %v451
  %992 = vmatprep.subr.mxu0 %v460
  %993 = vmatpush1.msra.mxu0 %v459
  %994 = vmatprep.subr.mxu0 %v468
  %995 = vmatpush1.msra.mxu0 %v467
  %996 = vmatprep.subr.mxu0 %v476
  %997 = vmatpush1.msra.mxu0 %v475
  %998 = vmatprep.subr.mxu0 %v484
  %999 = vmatpush1.msra.mxu0 %v483
  %1000 = vmatprep.subr.mxu0 %v492
  %1001 = vmatpush1.msra.mxu0 %v491
  %1002 = vmatprep.subr.mxu0 %v500
  %1003 = vmatpush1.msra.mxu0 %v499
  %1004 = vmatprep.subr.mxu0 %v508
  %1005 = vmatpush1.msra.mxu0 %v507
  %1006 = vmatprep.subr.mxu0 %v516
  %1007 = vmatpush1.msra.mxu0 %v515
  %1008 = vmatprep.subr.mxu0 %v524
  %1009 = vmatpush1.msra.mxu0 %v523
  %1010 = vmatprep.mubr.f32.mxu0 %v586
  %1011 = vmatmul.mubr.f32.gmra.mrb[0].mxu0 %v584
  %v1012 = vpop.f32.mrb[0].mxu0
  %v1013 = vadd.f32 %v942, %v1012
  %v1014 = vpop.f32.mrb[0].mxu0
  %v1015 = vadd.f32 %v944, %v1014
  %1016 = vdwg.mxu0
  %1017 = vmatprep.subr.mxu0 %v22
  %1018 = vmatpush1.msra.mxu0 %v21
  %1019 = vmatprep.subr.mxu0 %v30
  %1020 = vmatpush1.msra.mxu0 %v29
  %1021 = vmatprep.subr.mxu0 %v38
  %1022 = vmatpush1.msra.mxu0 %v37
  %1023 = vmatprep.subr.mxu0 %v46
  %1024 = vmatpush1.msra.mxu0 %v45
  %1025 = vmatprep.subr.mxu0 %v54
  %1026 = vmatpush1.msra.mxu0 %v53
  %1027 = vmatprep.subr.mxu0 %v62
  %1028 = vmatpush1.msra.mxu0 %v61
  %1029 = vmatprep.subr.mxu0 %v70
  %1030 = vmatpush1.msra.mxu0 %v69
  %1031 = vmatprep.subr.mxu0 %v78
  %1032 = vmatpush1.msra.mxu0 %v77
  %1033 = vmatprep.subr.mxu0 %v86
  %1034 = vmatpush1.msra.mxu0 %v85
  %1035 = vmatprep.subr.mxu0 %v94
  %1036 = vmatpush1.msra.mxu0 %v93
  %1037 = vmatprep.subr.mxu0 %v102
  %1038 = vmatpush1.msra.mxu0 %v101
  %1039 = vmatprep.subr.mxu0 %v110
  %1040 = vmatpush1.msra.mxu0 %v109
  %1041 = vmatprep.subr.mxu0 %v118
  %1042 = vmatpush1.msra.mxu0 %v117
  %1043 = vmatprep.subr.mxu0 %v126
  %1044 = vmatpush1.msra.mxu0 %v125
  %1045 = vmatprep.subr.mxu0 %v134
  %1046 = vmatpush1.msra.mxu0 %v133
  %1047 = vmatprep.subr.mxu0 %v142
  %1048 = vmatpush1.msra.mxu0 %v141
  %1049 = vmatprep.subr.mxu0 %v150
  %1050 = vmatpush1.msra.mxu0 %v149
  %1051 = vmatprep.subr.mxu0 %v158
  %1052 = vmatpush1.msra.mxu0 %v157
  %1053 = vmatprep.subr.mxu0 %v166
  %1054 = vmatpush1.msra.mxu0 %v165
  %1055 = vmatprep.subr.mxu0 %v174
  %1056 = vmatpush1.msra.mxu0 %v173
  %1057 = vmatprep.subr.mxu0 %v182
  %1058 = vmatpush1.msra.mxu0 %v181
  %1059 = vmatprep.subr.mxu0 %v190
  %1060 = vmatpush1.msra.mxu0 %v189
  %1061 = vmatprep.subr.mxu0 %v198
  %1062 = vmatpush1.msra.mxu0 %v197
  %1063 = vmatprep.subr.mxu0 %v206
  %1064 = vmatpush1.msra.mxu0 %v205
  %1065 = vmatprep.subr.mxu0 %v214
  %1066 = vmatpush1.msra.mxu0 %v213
  %1067 = vmatprep.subr.mxu0 %v222
  %1068 = vmatpush1.msra.mxu0 %v221
  %1069 = vmatprep.subr.mxu0 %v230
  %1070 = vmatpush1.msra.mxu0 %v229
  %1071 = vmatprep.subr.mxu0 %v238
  %1072 = vmatpush1.msra.mxu0 %v237
  %1073 = vmatprep.subr.mxu0 %v246
  %1074 = vmatpush1.msra.mxu0 %v245
  %1075 = vmatprep.subr.mxu0 %v254
  %1076 = vmatpush1.msra.mxu0 %v253
  %1077 = vmatprep.subr.mxu0 %v262
  %1078 = vmatpush1.msra.mxu0 %v261
  %1079 = vmatprep.subr.mxu0 %v270
  %1080 = vmatpush1.msra.mxu0 %v269
  %1081 = vmatprep.mubr.f32.mxu0 %v585
  %1082 = vmatmul.mubr.f32.gmra.mrb[0].mxu0 %v577
  %v1083 = vpop.f32.mrb[0].mxu0
  %v1084 = vadd.f32 %v556, %v1083
  %v1085 = vpop.f32.mrb[0].mxu0
  %v1086 = vadd.f32 %v560, %v1085
  %1087 = vdwg.mxu0
  %1088 = vmatprep.subr.mxu0 %v278
  %1089 = vmatpush1.msra.mxu0 %v277
  %1090 = vmatprep.subr.mxu0 %v286
  %1091 = vmatpush1.msra.mxu0 %v285
  %1092 = vmatprep.subr.mxu0 %v294
  %1093 = vmatpush1.msra.mxu0 %v293
  %1094 = vmatprep.subr.mxu0 %v302
  %1095 = vmatpush1.msra.mxu0 %v301
  %1096 = vmatprep.subr.mxu0 %v310
  %1097 = vmatpush1.msra.mxu0 %v309
  %1098 = vmatprep.subr.mxu0 %v318
  %1099 = vmatpush1.msra.mxu0 %v317
  %1100 = vmatprep.subr.mxu0 %v326
  %1101 = vmatpush1.msra.mxu0 %v325
  %1102 = vmatprep.subr.mxu0 %v334
  %1103 = vmatpush1.msra.mxu0 %v333
  %1104 = vmatprep.subr.mxu0 %v342
  %1105 = vmatpush1.msra.mxu0 %v341
  %1106 = vmatprep.subr.mxu0 %v350
  %1107 = vmatpush1.msra.mxu0 %v349
  %1108 = vmatprep.subr.mxu0 %v358
  %1109 = vmatpush1.msra.mxu0 %v357
  %1110 = vmatprep.subr.mxu0 %v366
  %1111 = vmatpush1.msra.mxu0 %v365
  %1112 = vmatprep.subr.mxu0 %v374
  %1113 = vmatpush1.msra.mxu0 %v373
  %1114 = vmatprep.subr.mxu0 %v382
  %1115 = vmatpush1.msra.mxu0 %v381
  %1116 = vmatprep.subr.mxu0 %v390
  %1117 = vmatpush1.msra.mxu0 %v389
  %1118 = vmatprep.subr.mxu0 %v398
  %1119 = vmatpush1.msra.mxu0 %v397
  %1120 = vmatprep.subr.mxu0 %v406
  %1121 = vmatpush1.msra.mxu0 %v405
  %1122 = vmatprep.subr.mxu0 %v414
  %1123 = vmatpush1.msra.mxu0 %v413
  %1124 = vmatprep.subr.mxu0 %v422
  %1125 = vmatpush1.msra.mxu0 %v421
  %1126 = vmatprep.subr.mxu0 %v430
  %1127 = vmatpush1.msra.mxu0 %v429
  %1128 = vmatprep.subr.mxu0 %v438
  %1129 = vmatpush1.msra.mxu0 %v437
  %1130 = vmatprep.subr.mxu0 %v446
  %1131 = vmatpush1.msra.mxu0 %v445
  %1132 = vmatprep.subr.mxu0 %v454
  %1133 = vmatpush1.msra.mxu0 %v453
  %1134 = vmatprep.subr.mxu0 %v462
  %1135 = vmatpush1.msra.mxu0 %v461
  %1136 = vmatprep.subr.mxu0 %v470
  %1137 = vmatpush1.msra.mxu0 %v469
  %1138 = vmatprep.subr.mxu0 %v478
  %1139 = vmatpush1.msra.mxu0 %v477
  %1140 = vmatprep.subr.mxu0 %v486
  %1141 = vmatpush1.msra.mxu0 %v485
  %1142 = vmatprep.subr.mxu0 %v494
  %1143 = vmatpush1.msra.mxu0 %v493
  %1144 = vmatprep.subr.mxu0 %v502
  %1145 = vmatpush1.msra.mxu0 %v501
  %1146 = vmatprep.subr.mxu0 %v510
  %1147 = vmatpush1.msra.mxu0 %v509
  %1148 = vmatprep.subr.mxu0 %v518
  %1149 = vmatpush1.msra.mxu0 %v517
  %1150 = vmatprep.subr.mxu0 %v526
  %1151 = vmatpush1.msra.mxu0 %v525
  %1152 = vmatprep.mubr.f32.mxu0 %v586
  %1153 = vmatmul.mubr.f32.gmra.mrb[0].mxu0 %v584
  %v1154 = vpop.f32.mrb[0].mxu0
  %v1155 = vadd.f32 %v1084, %v1154
  %v1156 = vpop.f32.mrb[0].mxu0
  %v1157 = vadd.f32 %v1086, %v1156
  %1158 = vdwg.mxu0
  %v1167 = vcombine.low %v729, %v731
  %v1168 = vcombine.low %v871, %v873
  %v1170 = vunpack.c.l.s4 1983009808
  %v1171 = vunpack.c.0.s8 %v1170
  %v1172 = vlaneseq
  %v1173 = vshrl.u32 %v1172, 7
  %v1174 = vsub.s32 %v1171, %v1173
  %v1175 = vrot.slane %v1167, %v1174
  %v1177 = vunpack.c.l.s4 1983009808
  %v1178 = vunpack.c.0.s8 %v1177
  %v1179 = vlaneseq
  %v1180 = vshrl.u32 %v1179, 7
  %v1181 = vsub.s32 %v1178, %v1180
  %v1182 = vrot.slane %v1168, %v1181
  %v1183 = vcombine.low %v1175, %v1182
  %v1184 = vcombine.low %v1013, %v1015
  %v1185 = vcombine.low %v1155, %v1157
  %v1187 = vunpack.c.l.s4 1983009808
  %v1188 = vunpack.c.0.s8 %v1187
  %v1189 = vlaneseq
  %v1190 = vshrl.u32 %v1189, 7
  %v1191 = vsub.s32 %v1188, %v1190
  %v1192 = vrot.slane %v1184, %v1191
  %v1194 = vunpack.c.l.s4 1983009808
  %v1195 = vunpack.c.0.s8 %v1194
  %v1196 = vlaneseq
  %v1197 = vshrl.u32 %v1196, 7
  %v1198 = vsub.s32 %v1195, %v1197
  %v1199 = vrot.slane %v1185, %v1198
  %v1200 = vcombine.low %v1192, %v1199
  %1203 = vst [vmem:[%s3] sm:$0xff] %v1183
  %1204 = vst [vmem:[%s3 + $0x8] sm:$0xff] %v1200
  // Predicated region
  $region14: #{updecoder1_forward.1} parent=0 // pred_check
    _
  $region15: #{updecoder1_forward.1} parent=0 // pred_check_branch
    %1206 = sbr.rel (0) target = $region17
  $region16: #{updecoder1_forward.1} parent=0 // pred_region
    _
  $region17: #{updecoder1_forward.1} parent=0 // pred_fallthru
    _
  // Predicated region
  $region18: #{updecoder1_forward.1} parent=0 // pred_check
    _
  $region19: #{updecoder1_forward.1} parent=0 // pred_check_branch
    %1208 = sbr.rel (0) target = $region21
  $region20: #{updecoder1_forward.1} parent=0 // pred_region
    _
  $region21: #{updecoder1_forward.1} parent=0 // pred_fallthru
    _

</llo_original>
